<compile_context>
chip_gen: v7x
topology: tpu7x:2x2x1
jax: 0.10.0
libtpu: 0.0.40
codegen_flags: <defaults>
</compile_context>

<pallas_src>
import jax
import jax.numpy as jnp
from jax.experimental import pallas as pl
from jax.experimental.pallas import tpu as pltpu

_EPS = 1e-12  # guards rsqrt against an all-zero feature row (torch would emit NaN)


def _clip_fused_kernel(img_ref, txt_ref, wi_ref, bi_ref, wt_ref, bt_ref,
                       img_o_ref, txt_o_ref):
    """Fused image+text encoder: bf16 MXU matmul + f32 bias + L2 row-normalize.

    Activations arrive f32 and are cast to bf16 in VMEM immediately before the
    MXU op; all post-matmul elementwise / reduce / rsqrt math stays f32.
    Outputs are written in the (bf16) output dtype.
    """
    # ---- image branch ----
    img_feat = jnp.dot(img_ref[...].astype(jnp.bfloat16), wi_ref[...],
                       preferred_element_type=jnp.float32)
    img_feat = img_feat + bi_ref[...]                         # (1, E) f32 broadcast
    img_inv = jax.lax.rsqrt(
        jnp.sum(img_feat * img_feat, axis=1, keepdims=True) + _EPS)
    img_o_ref[...] = (img_feat * img_inv).astype(img_o_ref.dtype)

    # ---- text branch ----
    txt_feat = jnp.dot(txt_ref[...].astype(jnp.bfloat16), wt_ref[...],
                       preferred_element_type=jnp.float32)
    txt_feat = txt_feat + bt_ref[...]
    txt_inv = jax.lax.rsqrt(
        jnp.sum(txt_feat * txt_feat, axis=1, keepdims=True) + _EPS)
    txt_o_ref[...] = (txt_feat * txt_inv).astype(txt_o_ref.dtype)


def _pick_row_tile(batch):
    """Row tile: big (>=256 preferred), sublane/MXU aligned, >=2 grid steps if possible.

    Candidates are multiples of 128 (v5e 128x128 MXU) down to 8 (sublane minimum);
    first pass insists on at least 2 grid steps so both v7x TensorCores get work.
    """
    candidates = (512, 256, 128, 64, 32, 16, 8)
    for tm in candidates:
        if tm <= batch and batch >= 2 * tm:
            return tm
    for tm in candidates:
        if tm <= batch:
            return tm
    return batch  # batch < 8: full-extent block is always legal


def _build_clip_call(B, D_img, D_txt, E, tm, out_dtype, single_buffer_consts):
    """Construct the fused pallas_call for the given static shapes."""
    grid = (pl.cdiv(B, tm),)  # ragged last block is handled by Pallas

    # Constant (revisited) weight/bias blocks: a second pipeline buffer is wasted
    # VMEM, so request single buffering when the installed JAX supports it.
    const_kwargs = (dict(pipeline_mode=pl.Buffered(buffer_count=1))
                    if single_buffer_consts else {})

    in_specs = [
        # activation rows stream with the batch grid (double-buffered, f32)
        pl.BlockSpec((tm, D_img), lambda i: (i, 0)),
        pl.BlockSpec((tm, D_txt), lambda i: (i, 0)),
        # weights / biases stay resident in VMEM across grid steps
        pl.BlockSpec((D_img, E), lambda i: (0, 0), **const_kwargs),
        pl.BlockSpec((1, E), lambda i: (0, 0), **const_kwargs),
        pl.BlockSpec((D_txt, E), lambda i: (0, 0), **const_kwargs),
        pl.BlockSpec((1, E), lambda i: (0, 0), **const_kwargs),
    ]
    out_specs = [
        pl.BlockSpec((tm, E), lambda i: (i, 0)),
        pl.BlockSpec((tm, E), lambda i: (i, 0)),
    ]

    # VMEM budget derived from the actual block sizes (v7x physical VMEM = 64 MiB).
    act_bytes = 2 * tm * (D_img + D_txt) * 4             # f32 activations, double-buffered
    wgt_bytes = (D_img + D_txt) * E * 2 + 2 * E * 4       # bf16 weights + f32 biases
    if not single_buffer_consts:
        wgt_bytes *= 2                                     # default double-buffering
    out_bytes = 2 * 2 * tm * E * 2                         # bf16 outputs, double-buffered
    tmp_bytes = 2 * tm * E * 4                             # f32 matmul/normalize temporaries
    needed = act_bytes + wgt_bytes + out_bytes + tmp_bytes
    vmem_limit = int(min(64 * 1024 * 1024, max(2 * needed, 16 * 1024 * 1024)))

    # Advisory cost hint for XLA's scheduler.
    flops = 2 * B * (D_img + D_txt) * E + 4 * B * E
    bytes_accessed = (
        4 * B * (D_img + D_txt)          # f32 activations (read once, cast in VMEM)
        + 2 * (D_img + D_txt) * E        # bf16 weights
        + 4 * 2 * E                      # f32 biases
        + 2 * 2 * B * E                  # bf16 outputs
    )
    cost = pl.CostEstimate(flops=flops, transcendentals=2 * B,
                           bytes_accessed=bytes_accessed)

    return pl.pallas_call(
        _clip_fused_kernel,
        out_shape=(jax.ShapeDtypeStruct((B, E), out_dtype),
                   jax.ShapeDtypeStruct((B, E), out_dtype)),
        grid_spec=pltpu.PrefetchScalarGridSpec(
            num_scalar_prefetch=0,
            grid=grid,
            in_specs=in_specs,
            out_specs=out_specs,
        ),
        compiler_params=pltpu.CompilerParams(
            # batch rows are independent -> megacore / dual-TC sharding
            dimension_semantics=("parallel",),
            vmem_limit_bytes=vmem_limit,
        ),
        cost_estimate=cost,
    )


def clip_forward(image, text, w_img, b_img, w_txt, b_txt,
                 out_dtype=jnp.bfloat16):
    """image: [B, D_img], text: [B, D_txt]  ->  two [B, E] L2-normalized features."""
    B, D_img = image.shape
    Bt, D_txt = text.shape
    assert B == Bt
    E = w_img.shape[1]
    assert w_img.shape == (D_img, E) and w_txt.shape == (D_txt, E)
    assert b_img.shape == (1, E) and b_txt.shape == (1, E)

    # Activations stay f32 on the way in; the bf16 cast happens inside the kernel
    # (no extra HBM read/write pass from a standalone XLA convert).
    image = image.astype(jnp.float32)
    text = text.astype(jnp.float32)
    w_img = w_img.astype(jnp.bfloat16)
    w_txt = w_txt.astype(jnp.bfloat16)
    b_img = b_img.astype(jnp.float32)
    b_txt = b_txt.astype(jnp.float32)

    tm = _pick_row_tile(B)

    try:
        call = _build_clip_call(B, D_img, D_txt, E, tm, out_dtype,
                                single_buffer_consts=True)
        return call(image, text, w_img, b_img, w_txt, b_txt)
    except Exception:
        # Fallback for JAX builds where pipeline_mode=pl.Buffered(1) is not
        # supported on this path: identical kernel with default buffering.
        call = _build_clip_call(B, D_img, D_txt, E, tm, out_dtype,
                                single_buffer_consts=False)
        return call(image, text, w_img, b_img, w_txt, b_txt)


class ClipLikeModel:
    """JAX/Pallas stand-in for the PyTorch `models` module forward pass."""

    def __init__(self, d_image=256, d_text=128, embed_dim=128, seed=0):
        key = jax.random.PRNGKey(seed)
        k1, k2, k3, k4 = jax.random.split(key, 4)
        # deterministic synthetic "encoder" weights (frozen, like CLIP params);
        # weights kept bf16 (MXU-native), biases f32.
        self.w_image = (jax.random.normal(k1, (d_image, embed_dim), jnp.float32)
                        / jnp.sqrt(d_image)).astype(jnp.bfloat16)
        self.b_image = jax.random.normal(k2, (1, embed_dim), jnp.float32) * 0.01
        self.w_text = (jax.random.normal(k3, (d_text, embed_dim), jnp.float32)
                       / jnp.sqrt(d_text)).astype(jnp.bfloat16)
        self.b_text = jax.random.normal(k4, (1, embed_dim), jnp.float32) * 0.01

    def forward(self, image, text):
        # image: [B, d_image] pre-extracted pixel features (preprocess stand-in)
        # text : [B, d_text]  pre-embedded token features (tokenize stand-in)
        return clip_forward(image, text,
                            self.w_image, self.b_image,
                            self.w_text, self.b_text)


def _reference_encode_normalize(x, w, b):
    feat = jnp.dot(x.astype(jnp.bfloat16), w.astype(jnp.bfloat16),
                   preferred_element_type=jnp.float32) + b.astype(jnp.float32)
    return feat / jnp.sqrt(jnp.sum(feat * feat, axis=1, keepdims=True) + _EPS)


if __name__ == "__main__":
    # B=16 with tm=8 gives a 2-step grid (exercises pipelining + dual-TC sharding)
    B, D_IMG, D_TXT, EMB = 16, 256, 128, 128

    key = jax.random.PRNGKey(0)
    k_img, k_txt = jax.random.split(key)
    image = jax.random.normal(k_img, (B, D_IMG), jnp.float32)
    text = jax.random.normal(k_txt, (B, D_TXT), jnp.float32)

    model = ClipLikeModel(d_image=D_IMG, d_text=D_TXT, embed_dim=EMB, seed=0)
    img_feat, txt_feat = model.forward(image, text)
    jax.block_until_ready((img_feat, txt_feat))

    # sanity: shapes, unit-norm rows (within bf16 rounding), agreement with pure-JAX ref
    assert img_feat.shape == (B, EMB) and txt_feat.shape == (B, EMB)
    img_norms = jnp.linalg.norm(img_feat.astype(jnp.float32), axis=1)
    txt_norms = jnp.linalg.norm(txt_feat.astype(jnp.float32), axis=1)
    assert jnp.allclose(img_norms, 1.0, atol=2e-2)
    assert jnp.allclose(txt_norms, 1.0, atol=2e-2)

    img_ref = _reference_encode_normalize(image, model.w_image, model.b_image)
    txt_ref = _reference_encode_normalize(text, model.w_text, model.b_text)
    assert jnp.allclose(img_feat.astype(jnp.float32), img_ref, atol=2e-2)
    assert jnp.allclose(txt_feat.astype(jnp.float32), txt_ref, atol=2e-2)

    print("KERNEL_OK")
</pallas_src>

<mosaic_0001>
module attributes {stable_mosaic.version = 11 : i64} {
  func.func @_clip_fused_kernel(%arg0: i32, %arg1: memref<8x256xf32, #tpu.memory_space<vmem>>, %arg2: memref<8x128xf32, #tpu.memory_space<vmem>>, %arg3: memref<256x128xbf16, #tpu.memory_space<vmem>>, %arg4: memref<1x128xf32, #tpu.memory_space<vmem>>, %arg5: memref<128x128xbf16, #tpu.memory_space<vmem>>, %arg6: memref<1x128xf32, #tpu.memory_space<vmem>>, %arg7: memref<8x128xbf16, #tpu.memory_space<vmem>>, %arg8: memref<8x128xbf16, #tpu.memory_space<vmem>>) attributes {dimension_semantics = [#tpu.dimension_semantics<parallel>], iteration_bounds = array<i64: 2>, scalar_prefetch = 0 : i64, scratch_operands = 0 : i64, tpu.core_type = #tpu.core_type<tc>, window_params = [{transform_indices = @transform_0, window_bounds = array<i64: 8, 256>}, {transform_indices = @transform_1, window_bounds = array<i64: 8, 128>}, {pipeline_mode = #tpu.pipeline_mode<synchronous>, transform_indices = @transform_2, window_bounds = array<i64: 256, 128>}, {pipeline_mode = #tpu.pipeline_mode<synchronous>, transform_indices = @transform_3, window_bounds = array<i64: 1, 128>}, {pipeline_mode = #tpu.pipeline_mode<synchronous>, transform_indices = @transform_4, window_bounds = array<i64: 128, 128>}, {pipeline_mode = #tpu.pipeline_mode<synchronous>, transform_indices = @transform_5, window_bounds = array<i64: 1, 128>}, {transform_indices = @transform_6, window_bounds = array<i64: 8, 128>}, {transform_indices = @transform_7, window_bounds = array<i64: 8, 128>}]} {
    %c0 = arith.constant 0 : index
    %c0_0 = arith.constant 0 : index
    %0 = vector.load %arg1[%c0, %c0_0] : memref<8x256xf32, #tpu.memory_space<vmem>>, vector<8x256xf32>
    %1 = arith.truncf %0 : vector<8x256xf32> to vector<8x256xbf16>
    %c0_1 = arith.constant 0 : index
    %c0_2 = arith.constant 0 : index
    %2 = vector.load %arg3[%c0_1, %c0_2] : memref<256x128xbf16, #tpu.memory_space<vmem>>, vector<256x128xbf16>
    %cst = arith.constant dense<0.000000e+00> : vector<8x128xf32>
    %3 = tpu.matmul %1, %2, %cst {dimension_numbers = #tpu.dot_dimension_numbers<[1], [0], [0], [1], [0, 0, 1, 1], [], []>} : vector<8x256xbf16>, vector<256x128xbf16>, vector<8x128xf32> -> vector<8x128xf32>
    %c0_3 = arith.constant 0 : index
    %c0_4 = arith.constant 0 : index
    %4 = vector.load %arg4[%c0_3, %c0_4] : memref<1x128xf32, #tpu.memory_space<vmem>>, vector<1x128xf32>
    %5 = vector.broadcast %4 : vector<1x128xf32> to vector<8x128xf32>
    %6 = arith.addf %3, %5 : vector<8x128xf32>
    %7 = arith.mulf %6, %6 : vector<8x128xf32>
    %cst_5 = arith.constant dense<0.000000e+00> : vector<8xf32>
    %8 = vector.multi_reduction <add>, %7, %cst_5 [1] : vector<8x128xf32> to vector<8xf32>
    %9 = vector.shape_cast %8 : vector<8xf32> to vector<8x1xf32>
    %cst_6 = arith.constant 9.99999996E-13 : f32
    %10 = vector.broadcast %cst_6 : f32 to vector<8x1xf32>
    %11 = arith.addf %9, %10 : vector<8x1xf32>
    %12 = math.rsqrt %11 : vector<8x1xf32>
    %13 = vector.broadcast %12 : vector<8x1xf32> to vector<8x128xf32>
    %14 = arith.mulf %6, %13 : vector<8x128xf32>
    %15 = arith.truncf %14 : vector<8x128xf32> to vector<8x128xbf16>
    %c0_7 = arith.constant 0 : index
    %c0_8 = arith.constant 0 : index
    %16 = vector.load %arg7[%c0_7, %c0_8] : memref<8x128xbf16, #tpu.memory_space<vmem>>, vector<8x128xbf16>
    tpu.vector_store %arg7[%c0_7, %c0_8], %15 {strides = array<i32>} : memref<8x128xbf16, #tpu.memory_space<vmem>>, vector<8x128xbf16>,
    %c0_9 = arith.constant 0 : index
    %c0_10 = arith.constant 0 : index
    %17 = vector.load %arg2[%c0_9, %c0_10] : memref<8x128xf32, #tpu.memory_space<vmem>>, vector<8x128xf32>
    %18 = arith.truncf %17 : vector<8x128xf32> to vector<8x128xbf16>
    %c0_11 = arith.constant 0 : index
    %c0_12 = arith.constant 0 : index
    %19 = vector.load %arg5[%c0_11, %c0_12] : memref<128x128xbf16, #tpu.memory_space<vmem>>, vector<128x128xbf16>
    %cst_13 = arith.constant dense<0.000000e+00> : vector<8x128xf32>
    %20 = tpu.matmul %18, %19, %cst_13 {dimension_numbers = #tpu.dot_dimension_numbers<[1], [0], [0], [1], [0, 0, 1, 1], [], []>} : vector<8x128xbf16>, vector<128x128xbf16>, vector<8x128xf32> -> vector<8x128xf32>
    %c0_14 = arith.constant 0 : index
    %c0_15 = arith.constant 0 : index
    %21 = vector.load %arg6[%c0_14, %c0_15] : memref<1x128xf32, #tpu.memory_space<vmem>>, vector<1x128xf32>
    %22 = vector.broadcast %21 : vector<1x128xf32> to vector<8x128xf32>
    %23 = arith.addf %20, %22 : vector<8x128xf32>
    %24 = arith.mulf %23, %23 : vector<8x128xf32>
    %cst_16 = arith.constant dense<0.000000e+00> : vector<8xf32>
    %25 = vector.multi_reduction <add>, %24, %cst_16 [1] : vector<8x128xf32> to vector<8xf32>
    %26 = vector.shape_cast %25 : vector<8xf32> to vector<8x1xf32>
    %cst_17 = arith.constant 9.99999996E-13 : f32
    %27 = vector.broadcast %cst_17 : f32 to vector<8x1xf32>
    %28 = arith.addf %26, %27 : vector<8x1xf32>
    %29 = math.rsqrt %28 : vector<8x1xf32>
    %30 = vector.broadcast %29 : vector<8x1xf32> to vector<8x128xf32>
    %31 = arith.mulf %23, %30 : vector<8x128xf32>
    %32 = arith.truncf %31 : vector<8x128xf32> to vector<8x128xbf16>
    %c0_18 = arith.constant 0 : index
    %c0_19 = arith.constant 0 : index
    %33 = vector.load %arg8[%c0_18, %c0_19] : memref<8x128xbf16, #tpu.memory_space<vmem>>, vector<8x128xbf16>
    tpu.vector_store %arg8[%c0_18, %c0_19], %32 {strides = array<i32>} : memref<8x128xbf16, #tpu.memory_space<vmem>>, vector<8x128xbf16>,
    return
  }
  func.func @transform_0(%arg0: i32) -> (i32, i32) {
    %c0_i32 = arith.constant 0 : i32
    %c0_i32_0 = arith.constant 0 : i32
    return %arg0, %c0_i32 : i32, i32
  }
  func.func @transform_1(%arg0: i32) -> (i32, i32) {
    %c0_i32 = arith.constant 0 : i32
    %c0_i32_0 = arith.constant 0 : i32
    return %arg0, %c0_i32 : i32, i32
  }
  func.func @transform_2(%arg0: i32) -> (i32, i32) {
    %c0_i32 = arith.constant 0 : i32
    %c0_i32_0 = arith.constant 0 : i32
    %c0_i32_1 = arith.constant 0 : i32
    return %c0_i32, %c0_i32_0 : i32, i32
  }
  func.func @transform_3(%arg0: i32) -> (i32, i32) {
    %c0_i32 = arith.constant 0 : i32
    %c0_i32_0 = arith.constant 0 : i32
    %c0_i32_1 = arith.constant 0 : i32
    return %c0_i32, %c0_i32_0 : i32, i32
  }
  func.func @transform_4(%arg0: i32) -> (i32, i32) {
    %c0_i32 = arith.constant 0 : i32
    %c0_i32_0 = arith.constant 0 : i32
    %c0_i32_1 = arith.constant 0 : i32
    return %c0_i32, %c0_i32_0 : i32, i32
  }
  func.func @transform_5(%arg0: i32) -> (i32, i32) {
    %c0_i32 = arith.constant 0 : i32
    %c0_i32_0 = arith.constant 0 : i32
    %c0_i32_1 = arith.constant 0 : i32
    return %c0_i32, %c0_i32_0 : i32, i32
  }
  func.func @transform_6(%arg0: i32) -> (i32, i32) {
    %c0_i32 = arith.constant 0 : i32
    %c0_i32_0 = arith.constant 0 : i32
    return %arg0, %c0_i32 : i32, i32
  }
  func.func @transform_7(%arg0: i32) -> (i32, i32) {
    %c0_i32 = arith.constant 0 : i32
    %c0_i32_0 = arith.constant 0 : i32
    return %arg0, %c0_i32 : i32, i32
  }
}

module attributes {stable_mosaic.version = 11 : i64} {
  func.func @_clip_fused_kernel(%arg0: i32, %arg1: memref<8x256xf32, #tpu.memory_space<vmem>>, %arg2: memref<8x128xf32, #tpu.memory_space<vmem>>, %arg3: memref<256x128xbf16, #tpu.memory_space<vmem>>, %arg4: memref<1x128xf32, #tpu.memory_space<vmem>>, %arg5: memref<128x128xbf16, #tpu.memory_space<vmem>>, %arg6: memref<1x128xf32, #tpu.memory_space<vmem>>, %arg7: memref<8x128xbf16, #tpu.memory_space<vmem>>, %arg8: memref<8x128xbf16, #tpu.memory_space<vmem>>) attributes {dimension_semantics = [#tpu.dimension_semantics<parallel>], iteration_bounds = array<i64: 2>, scalar_prefetch = 0 : i64, scratch_operands = 0 : i64, tpu.core_type = #tpu.core_type<tc>, window_params = [{transform_indices = @transform_0, window_bounds = array<i64: 8, 256>}, {transform_indices = @transform_1, window_bounds = array<i64: 8, 128>}, {pipeline_mode = #tpu.pipeline_mode<synchronous>, transform_indices = @transform_2, window_bounds = array<i64: 256, 128>}, {pipeline_mode = #tpu.pipeline_mode<synchronous>, transform_indices = @transform_3, window_bounds = array<i64: 1, 128>}, {pipeline_mode = #tpu.pipeline_mode<synchronous>, transform_indices = @transform_4, window_bounds = array<i64: 128, 128>}, {pipeline_mode = #tpu.pipeline_mode<synchronous>, transform_indices = @transform_5, window_bounds = array<i64: 1, 128>}, {transform_indices = @transform_6, window_bounds = array<i64: 8, 128>}, {transform_indices = @transform_7, window_bounds = array<i64: 8, 128>}]} {
    %c0 = arith.constant 0 : index
    %c0_0 = arith.constant 0 : index
    %0 = vector.load %arg1[%c0, %c0_0] : memref<8x256xf32, #tpu.memory_space<vmem>>, vector<8x256xf32>
    %1 = arith.truncf %0 : vector<8x256xf32> to vector<8x256xbf16>
    %c0_1 = arith.constant 0 : index
    %c0_2 = arith.constant 0 : index
    %2 = vector.load %arg3[%c0_1, %c0_2] : memref<256x128xbf16, #tpu.memory_space<vmem>>, vector<256x128xbf16>
    %cst = arith.constant dense<0.000000e+00> : vector<8x128xf32>
    %3 = tpu.matmul %1, %2, %cst {dimension_numbers = #tpu.dot_dimension_numbers<[1], [0], [0], [1], [0, 0, 1, 1], [], []>} : vector<8x256xbf16>, vector<256x128xbf16>, vector<8x128xf32> -> vector<8x128xf32>
    %c0_3 = arith.constant 0 : index
    %c0_4 = arith.constant 0 : index
    %4 = vector.load %arg4[%c0_3, %c0_4] : memref<1x128xf32, #tpu.memory_space<vmem>>, vector<1x128xf32>
    %5 = vector.broadcast %4 : vector<1x128xf32> to vector<8x128xf32>
    %6 = arith.addf %3, %5 : vector<8x128xf32>
    %7 = arith.mulf %6, %6 : vector<8x128xf32>
    %cst_5 = arith.constant dense<0.000000e+00> : vector<8xf32>
    %8 = vector.multi_reduction <add>, %7, %cst_5 [1] : vector<8x128xf32> to vector<8xf32>
    %9 = vector.shape_cast %8 : vector<8xf32> to vector<8x1xf32>
    %cst_6 = arith.constant 9.99999996E-13 : f32
    %10 = vector.broadcast %cst_6 : f32 to vector<8x1xf32>
    %11 = arith.addf %9, %10 : vector<8x1xf32>
    %12 = math.rsqrt %11 : vector<8x1xf32>
    %13 = vector.broadcast %12 : vector<8x1xf32> to vector<8x128xf32>
    %14 = arith.mulf %6, %13 : vector<8x128xf32>
    %15 = arith.truncf %14 : vector<8x128xf32> to vector<8x128xbf16>
    %c0_7 = arith.constant 0 : index
    %c0_8 = arith.constant 0 : index
    %16 = vector.load %arg7[%c0_7, %c0_8] : memref<8x128xbf16, #tpu.memory_space<vmem>>, vector<8x128xbf16>
    tpu.vector_store %arg7[%c0_7, %c0_8], %15 {strides = array<i32>} : memref<8x128xbf16, #tpu.memory_space<vmem>>, vector<8x128xbf16>,
    %c0_9 = arith.constant 0 : index
    %c0_10 = arith.constant 0 : index
    %17 = vector.load %arg2[%c0_9, %c0_10] : memref<8x128xf32, #tpu.memory_space<vmem>>, vector<8x128xf32>
    %18 = arith.truncf %17 : vector<8x128xf32> to vector<8x128xbf16>
    %c0_11 = arith.constant 0 : index
    %c0_12 = arith.constant 0 : index
    %19 = vector.load %arg5[%c0_11, %c0_12] : memref<128x128xbf16, #tpu.memory_space<vmem>>, vector<128x128xbf16>
    %cst_13 = arith.constant dense<0.000000e+00> : vector<8x128xf32>
    %20 = tpu.matmul %18, %19, %cst_13 {dimension_numbers = #tpu.dot_dimension_numbers<[1], [0], [0], [1], [0, 0, 1, 1], [], []>} : vector<8x128xbf16>, vector<128x128xbf16>, vector<8x128xf32> -> vector<8x128xf32>
    %c0_14 = arith.constant 0 : index
    %c0_15 = arith.constant 0 : index
    %21 = vector.load %arg6[%c0_14, %c0_15] : memref<1x128xf32, #tpu.memory_space<vmem>>, vector<1x128xf32>
    %22 = vector.broadcast %21 : vector<1x128xf32> to vector<8x128xf32>
    %23 = arith.addf %20, %22 : vector<8x128xf32>
    %24 = arith.mulf %23, %23 : vector<8x128xf32>
    %cst_16 = arith.constant dense<0.000000e+00> : vector<8xf32>
    %25 = vector.multi_reduction <add>, %24, %cst_16 [1] : vector<8x128xf32> to vector<8xf32>
    %26 = vector.shape_cast %25 : vector<8xf32> to vector<8x1xf32>
    %cst_17 = arith.constant 9.99999996E-13 : f32
    %27 = vector.broadcast %cst_17 : f32 to vector<8x1xf32>
    %28 = arith.addf %26, %27 : vector<8x1xf32>
    %29 = math.rsqrt %28 : vector<8x1xf32>
    %30 = vector.broadcast %29 : vector<8x1xf32> to vector<8x128xf32>
    %31 = arith.mulf %23, %30 : vector<8x128xf32>
    %32 = arith.truncf %31 : vector<8x128xf32> to vector<8x128xbf16>
    %c0_18 = arith.constant 0 : index
    %c0_19 = arith.constant 0 : index
    %33 = vector.load %arg8[%c0_18, %c0_19] : memref<8x128xbf16, #tpu.memory_space<vmem>>, vector<8x128xbf16>
    tpu.vector_store %arg8[%c0_18, %c0_19], %32 {strides = array<i32>} : memref<8x128xbf16, #tpu.memory_space<vmem>>, vector<8x128xbf16>,
    return
  }
  func.func @transform_0(%arg0: i32) -> (i32, i32) {
    %c0_i32 = arith.constant 0 : i32
    %c0_i32_0 = arith.constant 0 : i32
    return %arg0, %c0_i32 : i32, i32
  }
  func.func @transform_1(%arg0: i32) -> (i32, i32) {
    %c0_i32 = arith.constant 0 : i32
    %c0_i32_0 = arith.constant 0 : i32
    return %arg0, %c0_i32 : i32, i32
  }
  func.func @transform_2(%arg0: i32) -> (i32, i32) {
    %c0_i32 = arith.constant 0 : i32
    %c0_i32_0 = arith.constant 0 : i32
    %c0_i32_1 = arith.constant 0 : i32
    return %c0_i32, %c0_i32_0 : i32, i32
  }
  func.func @transform_3(%arg0: i32) -> (i32, i32) {
    %c0_i32 = arith.constant 0 : i32
    %c0_i32_0 = arith.constant 0 : i32
    %c0_i32_1 = arith.constant 0 : i32
    return %c0_i32, %c0_i32_0 : i32, i32
  }
  func.func @transform_4(%arg0: i32) -> (i32, i32) {
    %c0_i32 = arith.constant 0 : i32
    %c0_i32_0 = arith.constant 0 : i32
    %c0_i32_1 = arith.constant 0 : i32
    return %c0_i32, %c0_i32_0 : i32, i32
  }
  func.func @transform_5(%arg0: i32) -> (i32, i32) {
    %c0_i32 = arith.constant 0 : i32
    %c0_i32_0 = arith.constant 0 : i32
    %c0_i32_1 = arith.constant 0 : i32
    return %c0_i32, %c0_i32_0 : i32, i32
  }
  func.func @transform_6(%arg0: i32) -> (i32, i32) {
    %c0_i32 = arith.constant 0 : i32
    %c0_i32_0 = arith.constant 0 : i32
    return %arg0, %c0_i32 : i32, i32
  }
  func.func @transform_7(%arg0: i32) -> (i32, i32) {
    %c0_i32 = arith.constant 0 : i32
    %c0_i32_0 = arith.constant 0 : i32
    return %arg0, %c0_i32 : i32, i32
  }
}

</mosaic_0001>

<llo_original>
// kernel: tpu_custom_call.1
$region0: #{tpu_custom_call.1}
  #allocation0 [shape = 'u32[]', space=smem, size = 0x4, offset = 0x4, fixed_abs, tag = 'smem constant byte address 0x4 - core index']
  #allocation1 [shape = 'u32[144,128]{1,0:T(1,128)}', space=vmem, size = 0x12000, scoped, tag = 'internal scratch']
  %s0 = inlined_call_operand.hbm [shape: f32[16,256], index: 0, kind: input, shape index: {}]
  %s1 = inlined_call_operand.hbm [shape: f32[16,128], index: 1, kind: input, shape index: {}]
  %s2 = inlined_call_operand.hbm [shape: bf16[256,128], index: 2, kind: input, shape index: {}]
  %s3 = inlined_call_operand.vmem [shape: f32[1,128], index: 3, kind: input, shape index: {}]
  %s4 = inlined_call_operand.hbm [shape: bf16[128,128], index: 4, kind: input, shape index: {}]
  %s5 = inlined_call_operand.vmem [shape: f32[1,128], index: 5, kind: input, shape index: {}]
  %s6 = inlined_call_operand.hbm [shape: bf16[16,128], index: 6, kind: output, shape index: {0}]
  %s7 = inlined_call_operand.hbm [shape: bf16[16,128], index: 7, kind: output, shape index: {1}]
  %8 = xla_tuple %s6, %s7
  %s9 = sld [smem:[#allocation0]]
  $region81: #{tpu_custom_call.1} parent=0
    _
  %s11 = ssub.s32 1, %s9
  %s12 = scalar_select 0, %s11, %s9
  $region1: #{tpu_custom_call.1} parent=0
    #allocation2 [shape = 'u8[16384]{0}', space=vmem, size = 0x4000, scoped, tag = 'input window, operand 0']
    #allocation3 [shape = 's32[2]{0}', space=sflag, size = 0x8, scoped, tag = 'scoped memory for tpu_custom_call.1']
    #allocation4 [shape = 's32[2]{0}', space=sflag, size = 0x8, scoped, tag = 'scoped memory for tpu_custom_call.1']
    #allocation5 [shape = 'u8[8192]{0}', space=vmem, size = 0x2000, scoped, tag = 'input window, operand 1']
    #allocation6 [shape = 's32[2]{0}', space=sflag, size = 0x8, scoped, tag = 'scoped memory for tpu_custom_call.1']
    #allocation7 [shape = 'u8[65536]{0}', space=vmem, size = 0x10000, scoped, tag = 'input window, operand 2, single buffered']
    #allocation8 [shape = 'u8[32768]{0}', space=vmem, size = 0x8000, scoped, tag = 'input window, operand 4, single buffered']
    #allocation9 [shape = 's32[1]{0}', space=sflag, size = 0x4, scoped, tag = 'scoped memory for tpu_custom_call.1']
    #allocation10 [shape = 'u8[4096]{0}', space=vmem, size = 0x1000, scoped, tag = 'output window, operand 0']
    #allocation11 [shape = 'u8[4096]{0}', space=vmem, size = 0x1000, scoped, tag = 'output window, operand 1']
    #allocation12 [shape = 's32[2]{0}', space=sflag, size = 0x8, scoped, tag = 'scoped memory for tpu_custom_call.1']
    %13 = vsyncpa [#allocation3], 0
    %s14 = scalar_lea.sflag [#allocation3], 1
    %15 = vsyncpa %s14, 0
    %16 = vsyncpa [#allocation6], 0
    %s17 = scalar_lea.sflag [#allocation6], 1
    %18 = vsyncpa %s17, 0
    %19 = vsyncpa [#allocation9], 0
    %20 = vsyncpa [#allocation4], 0
    %s21 = scalar_lea.sflag [#allocation4], 1
    %22 = vsyncpa %s21, 0
    %23 = vsyncpa [#allocation12], 0
    %s24 = scalar_lea.sflag [#allocation12], 1
    %25 = vsyncpa %s24, 0
    loop: start=0, step=1, limit=4
    $region2: #{tpu_custom_call.1} parent=1 // loop_pre_header
      _
    $region3: #{tpu_custom_call.1} parent=1 // loop_header
      %s27 = sphi 0, %s31
      %p28 = scmp.ge.s32.totalorder %s27, 4
      %s37 = sphi 0, %s39
      %s40 = sphi 0, %s37
      %s41 = sphi 0, %s40
      %s57 = sphi 0, %s41
      %s63 = sphi 0, %s65
      %s66 = sphi 0, %s63
      %s67 = sphi 0, %s66
      %s83 = sphi 0, %s67
      %s87 = sphi 0, %s87
      %s89 = sphi 0, %s87
      %s90 = sphi 0, %s89
      %s104 = sphi 0, %s90
      %s108 = sphi 0, %s108
      %s110 = sphi 0, %s108
      %s111 = sphi 0, %s110
      %s125 = sphi 0, %s111
      %s129 = sphi 0, %s129
      %s131 = sphi 0, %s129
      %s132 = sphi 0, %s131
      %s146 = sphi 0, %s132
      %s150 = sphi 0, %s150
      %s152 = sphi 0, %s150
      %s153 = sphi 0, %s152
      %s167 = sphi 0, %s153
      %s173 = sphi 0, %s175
      %s176 = sphi 0, %s173
      %s177 = sphi 0, %s176
      %s193 = sphi 0, %s177
      %s199 = sphi 0, %s201
      %s202 = sphi 0, %s199
      %s203 = sphi 0, %s202
      %s219 = sphi 0, %s203
    $region4: #{tpu_custom_call.1} parent=1 // loop_header_branch
      %30 = sbr.rel (%p28) target = $region8
    $region5: #{tpu_custom_call.1} parent=1 // loop_body
      %s32 = ssub.s32 %s27, 1
      %s33 = ssub.s32 %s27, 2
      %s34 = sadd.s32 %s27, 1
      %s35 = ssub.s32 %s27, %s34
      %p36 = scmp.eq.s32.totalorder %s35, 0
      %s38 = sadd.s32 %s37, 1
      %s39 = scalar_select %p36, %s37, %s38
      %p42 = pneg %p36
      %p43 = scmp.eq.s32.totalorder %s27, 1
      %p44 = por %p42, %p43
      %p45 = scmp.ne.s32.totalorder %s37, %s40
      %p46 = scmp.eq.s32.totalorder %s27, 0
      %p47 = por %p45, %p46
      %p48 = scmp.ne.s32.totalorder %s37, %s40
      %p49 = scmp.eq.s32.totalorder %s32, 1
      %p50 = por %p48, %p49
      %p51 = scmp.ne.s32.totalorder %s40, %s41
      %p52 = scmp.eq.s32.totalorder %s32, 0
      %p53 = por %p51, %p52
      %p54 = scmp.ne.s32.totalorder %s40, %s41
      %p55 = scmp.eq.s32.totalorder %s33, 1
      %p56 = por %p54, %p55
      %p58 = scmp.ne.s32.totalorder %s41, %s57
      %p59 = scmp.eq.s32.totalorder %s33, 0
      %p60 = por %p58, %p59
      %s61 = ssub.s32 %s27, %s34
      %p62 = scmp.eq.s32.totalorder %s61, 0
      %s64 = sadd.s32 %s63, 1
      %s65 = scalar_select %p62, %s63, %s64
      %p68 = pneg %p62
      %p69 = scmp.eq.s32.totalorder %s27, 1
      %p70 = por %p68, %p69
      %p71 = scmp.ne.s32.totalorder %s63, %s66
      %p72 = scmp.eq.s32.totalorder %s27, 0
      %p73 = por %p71, %p72
      %p74 = scmp.ne.s32.totalorder %s63, %s66
      %p75 = scmp.eq.s32.totalorder %s32, 1
      %p76 = por %p74, %p75
      %p77 = scmp.ne.s32.totalorder %s66, %s67
      %p78 = scmp.eq.s32.totalorder %s32, 0
      %p79 = por %p77, %p78
      %p80 = scmp.ne.s32.totalorder %s66, %s67
      %p81 = scmp.eq.s32.totalorder %s33, 1
      %p82 = por %p80, %p81
      %p84 = scmp.ne.s32.totalorder %s67, %s83
      %p85 = scmp.eq.s32.totalorder %s33, 0
      %p86 = por %p84, %p85
      %s88 = sadd.s32 %s87, 1
      %p91 = scmp.eq.s32.totalorder %s27, 1
      %p92 = scmp.ne.s32.totalorder %s87, %s89
      %p93 = scmp.eq.s32.totalorder %s27, 0
      %p94 = por %p92, %p93
      %p95 = scmp.ne.s32.totalorder %s87, %s89
      %p96 = scmp.eq.s32.totalorder %s32, 1
      %p97 = por %p95, %p96
      %p98 = scmp.ne.s32.totalorder %s89, %s90
      %p99 = scmp.eq.s32.totalorder %s32, 0
      %p100 = por %p98, %p99
      %p101 = scmp.ne.s32.totalorder %s89, %s90
      %p102 = scmp.eq.s32.totalorder %s33, 1
      %p103 = por %p101, %p102
      %p105 = scmp.ne.s32.totalorder %s90, %s104
      %p106 = scmp.eq.s32.totalorder %s33, 0
      %p107 = por %p105, %p106
      %s109 = sadd.s32 %s108, 1
      %p112 = scmp.eq.s32.totalorder %s27, 1
      %p113 = scmp.ne.s32.totalorder %s108, %s110
      %p114 = scmp.eq.s32.totalorder %s27, 0
      %p115 = por %p113, %p114
      %p116 = scmp.ne.s32.totalorder %s108, %s110
      %p117 = scmp.eq.s32.totalorder %s32, 1
      %p118 = por %p116, %p117
      %p119 = scmp.ne.s32.totalorder %s110, %s111
      %p120 = scmp.eq.s32.totalorder %s32, 0
      %p121 = por %p119, %p120
      %p122 = scmp.ne.s32.totalorder %s110, %s111
      %p123 = scmp.eq.s32.totalorder %s33, 1
      %p124 = por %p122, %p123
      %p126 = scmp.ne.s32.totalorder %s111, %s125
      %p127 = scmp.eq.s32.totalorder %s33, 0
      %p128 = por %p126, %p127
      %s130 = sadd.s32 %s129, 1
      %p133 = scmp.eq.s32.totalorder %s27, 1
      %p134 = scmp.ne.s32.totalorder %s129, %s131
      %p135 = scmp.eq.s32.totalorder %s27, 0
      %p136 = por %p134, %p135
      %p137 = scmp.ne.s32.totalorder %s129, %s131
      %p138 = scmp.eq.s32.totalorder %s32, 1
      %p139 = por %p137, %p138
      %p140 = scmp.ne.s32.totalorder %s131, %s132
      %p141 = scmp.eq.s32.totalorder %s32, 0
      %p142 = por %p140, %p141
      %p143 = scmp.ne.s32.totalorder %s131, %s132
      %p144 = scmp.eq.s32.totalorder %s33, 1
      %p145 = por %p143, %p144
      %p147 = scmp.ne.s32.totalorder %s132, %s146
      %p148 = scmp.eq.s32.totalorder %s33, 0
      %p149 = por %p147, %p148
      %s151 = sadd.s32 %s150, 1
      %p154 = scmp.eq.s32.totalorder %s27, 1
      %p155 = scmp.ne.s32.totalorder %s150, %s152
      %p156 = scmp.eq.s32.totalorder %s27, 0
      %p157 = por %p155, %p156
      %p158 = scmp.ne.s32.totalorder %s150, %s152
      %p159 = scmp.eq.s32.totalorder %s32, 1
      %p160 = por %p158, %p159
      %p161 = scmp.ne.s32.totalorder %s152, %s153
      %p162 = scmp.eq.s32.totalorder %s32, 0
      %p163 = por %p161, %p162
      %p164 = scmp.ne.s32.totalorder %s152, %s153
      %p165 = scmp.eq.s32.totalorder %s33, 1
      %p166 = por %p164, %p165
      %p168 = scmp.ne.s32.totalorder %s153, %s167
      %p169 = scmp.eq.s32.totalorder %s33, 0
      %p170 = por %p168, %p169
      %s171 = ssub.s32 %s27, %s34
      %p172 = scmp.eq.s32.totalorder %s171, 0
      %s174 = sadd.s32 %s173, 1
      %s175 = scalar_select %p172, %s173, %s174
      %p178 = pneg %p172
      %p179 = scmp.eq.s32.totalorder %s27, 1
      %p180 = por %p178, %p179
      %p181 = scmp.ne.s32.totalorder %s173, %s176
      %p182 = scmp.eq.s32.totalorder %s27, 0
      %p183 = por %p181, %p182
      %p184 = scmp.ne.s32.totalorder %s173, %s176
      %p185 = scmp.eq.s32.totalorder %s32, 1
      %p186 = por %p184, %p185
      %p187 = scmp.ne.s32.totalorder %s176, %s177
      %p188 = scmp.eq.s32.totalorder %s32, 0
      %p189 = por %p187, %p188
      %p190 = scmp.ne.s32.totalorder %s176, %s177
      %p191 = scmp.eq.s32.totalorder %s33, 1
      %p192 = por %p190, %p191
      %p194 = scmp.ne.s32.totalorder %s177, %s193
      %p195 = scmp.eq.s32.totalorder %s33, 0
      %p196 = por %p194, %p195
      %s197 = ssub.s32 %s27, %s34
      %p198 = scmp.eq.s32.totalorder %s197, 0
      %s200 = sadd.s32 %s199, 1
      %s201 = scalar_select %p198, %s199, %s200
      %p204 = pneg %p198
      %p205 = scmp.eq.s32.totalorder %s27, 1
      %p206 = por %p204, %p205
      %p207 = scmp.ne.s32.totalorder %s199, %s202
      %p208 = scmp.eq.s32.totalorder %s27, 0
      %p209 = por %p207, %p208
      %p210 = scmp.ne.s32.totalorder %s199, %s202
      %p211 = scmp.eq.s32.totalorder %s32, 1
      %p212 = por %p210, %p211
      %p213 = scmp.ne.s32.totalorder %s202, %s203
      %p214 = scmp.eq.s32.totalorder %s32, 0
      %p215 = por %p213, %p214
      %p216 = scmp.ne.s32.totalorder %s202, %s203
      %p217 = scmp.eq.s32.totalorder %s33, 1
      %p218 = por %p216, %p217
      %p220 = scmp.ne.s32.totalorder %s203, %s219
      %p221 = scmp.eq.s32.totalorder %s33, 0
      %p222 = por %p220, %p221
      %p223 = scmp.le.s32.totalorder 1, %s27
      %p224 = scmp.lt.s32.totalorder %s27, 3
      %p225 = pnand %p223, %p224
      %p226 = pneg %p225
      // Predicated region
      $region9: #{tpu_custom_call.1} parent=5 // pred_check
        _
      $region10: #{tpu_custom_call.1} parent=5 // pred_check_branch
        %228 = sbr.rel (%p225) target = $region12
      $region11: #{tpu_custom_call.1} parent=5 // pred_region
        %s229 = ssub.s32 %s27, 1
        // Predicated region
        $region13: #{tpu_custom_call.1} parent=11 // pred_check
          %p230 = pneg %p100
        $region14: #{tpu_custom_call.1} parent=11 // pred_check_branch
          %232 = sbr.rel (%p230) target = $region16
        $region15: #{tpu_custom_call.1} parent=11 // pred_region
          %s234 = ssub.s32 2048, 2048
          %235 = vsyncadd [#allocation6], %s234
          %s236 = sshll.u32 [#allocation7], 4
          %s237 = int_to_ptr.vmem [resolvable:$true] %s236
          %242 = dma.hbm_to_vmem [thread:$0]  %s2, 2048, %s237, [#allocation6], 64, 64, 4
        $region16: #{tpu_custom_call.1} parent=11 // pred_fallthru
          _
        // Predicated region
        $region17: #{tpu_custom_call.1} parent=11 // pred_check
          %p243 = pneg %p121
        $region18: #{tpu_custom_call.1} parent=11 // pred_check_branch
          %245 = sbr.rel (%p243) target = $region20
        $region19: #{tpu_custom_call.1} parent=11 // pred_region
          _
        $region20: #{tpu_custom_call.1} parent=11 // pred_fallthru
          _
        // Predicated region
        $region21: #{tpu_custom_call.1} parent=11 // pred_check
          %p246 = pneg %p142
        $region22: #{tpu_custom_call.1} parent=11 // pred_check_branch
          %248 = sbr.rel (%p246) target = $region24
        $region23: #{tpu_custom_call.1} parent=11 // pred_region
          %s250 = ssub.s32 1024, 1024
          %251 = vsyncadd [#allocation9], %s250
          %s252 = sshll.u32 [#allocation8], 4
          %s253 = int_to_ptr.vmem [resolvable:$true] %s252
          %258 = dma.hbm_to_vmem [thread:$0]  %s4, 1024, %s253, [#allocation9], 64, 64, 4
        $region24: #{tpu_custom_call.1} parent=11 // pred_fallthru
          _
        // Predicated region
        $region25: #{tpu_custom_call.1} parent=11 // pred_check
          %p259 = pneg %p163
        $region26: #{tpu_custom_call.1} parent=11 // pred_check_branch
          %261 = sbr.rel (%p259) target = $region28
        $region27: #{tpu_custom_call.1} parent=11 // pred_region
          _
        $region28: #{tpu_custom_call.1} parent=11 // pred_fallthru
          _
      $region12: #{tpu_custom_call.1} parent=5 // pred_fallthru
        _
      %p262 = scmp.lt.s32.totalorder %s27, 2
      // Predicated region
      $region29: #{tpu_custom_call.1} parent=5 // pred_check
        %p263 = pneg %p262
      $region30: #{tpu_custom_call.1} parent=5 // pred_check_branch
        %265 = sbr.rel (%p263) target = $region32
      $region31: #{tpu_custom_call.1} parent=5 // pred_region
        // Predicated region
        $region33: #{tpu_custom_call.1} parent=31 // pred_check
          %p266 = pneg %p47
        $region34: #{tpu_custom_call.1} parent=31 // pred_check_branch
          %268 = sbr.rel (%p266) target = $region36
        $region35: #{tpu_custom_call.1} parent=31 // pred_region
          %s269 = sand.u32 %s37, 1
          %s270 = scalar_lea.sflag [#allocation3], %s269
          %s271 = sand.u32 %s37, 1
          %s272 = smul.addr %s271, 16
          %s273 = scalar_lea.vmem [#allocation2], %s272
          %s275 = ssub.s32 256, 256
          %276 = vsyncadd %s270, %s275
          %s277 = smul.addr %s27, 2
          %s278 = smul.addr %s277, 128
          %s279 = scalar_lea.hbm %s0, %s278
          %s281 = sshll.u32 %s273, 4
          %s282 = int_to_ptr.vmem [resolvable:$true] %s281
          %284 = dma.hbm_to_vmem [thread:$0]  %s279, 256, %s282, %s270
        $region36: #{tpu_custom_call.1} parent=31 // pred_fallthru
          _
        // Predicated region
        $region37: #{tpu_custom_call.1} parent=31 // pred_check
          %p285 = pneg %p73
        $region38: #{tpu_custom_call.1} parent=31 // pred_check_branch
          %287 = sbr.rel (%p285) target = $region40
        $region39: #{tpu_custom_call.1} parent=31 // pred_region
          %s288 = sand.u32 %s27, 1
          %s289 = scalar_lea.sflag [#allocation6], %s288
          %s290 = sand.u32 %s63, 1
          %s291 = smul.addr %s290, 8
          %s292 = scalar_lea.vmem [#allocation5], %s291
          %s294 = ssub.s32 128, 128
          %295 = vsyncadd %s289, %s294
          %s296 = smul.addr %s27, 128
          %s297 = scalar_lea.hbm %s1, %s296
          %s299 = sshll.u32 %s292, 4
          %s300 = int_to_ptr.vmem [resolvable:$true] %s299
          %302 = dma.hbm_to_vmem [thread:$0]  %s297, 128, %s300, %s289
        $region40: #{tpu_custom_call.1} parent=31 // pred_fallthru
          _
      $region32: #{tpu_custom_call.1} parent=5 // pred_fallthru
        _
      %p303 = scmp.le.s32.totalorder 1, %s27
      %p304 = scmp.lt.s32.totalorder %s27, 3
      %p305 = pnand %p303, %p304
      %p306 = pneg %p305
      // Predicated region
      $region41: #{tpu_custom_call.1} parent=5 // pred_check
        _
      $region42: #{tpu_custom_call.1} parent=5 // pred_check_branch
        %308 = sbr.rel (%p305) target = $region44
      $region43: #{tpu_custom_call.1} parent=5 // pred_region
        %s309 = ssub.s32 %s27, 1
        %s310 = sand.u32 %s40, 1
        %s311 = scalar_lea.sflag [#allocation3], %s310
        %s312 = sand.u32 %s40, 1
        %s313 = smul.addr %s312, 16
        %s314 = scalar_lea.vmem [#allocation2], %s313
        // Predicated region
        $region45: #{tpu_custom_call.1} parent=43 // pred_check
          %p315 = pneg %p53
        $region46: #{tpu_custom_call.1} parent=43 // pred_check_branch
          %317 = sbr.rel (%p315) target = $region48
        $region47: #{tpu_custom_call.1} parent=43 // pred_region
          %318 = dma.done %s311, 256
        $region48: #{tpu_custom_call.1} parent=43 // pred_fallthru
          _
        %s319 = sand.u32 %s32, 1
        %s320 = scalar_lea.sflag [#allocation6], %s319
        %s321 = sand.u32 %s66, 1
        %s322 = smul.addr %s321, 8
        %s323 = scalar_lea.vmem [#allocation5], %s322
        // Predicated region
        $region49: #{tpu_custom_call.1} parent=43 // pred_check
          %p324 = pneg %p79
        $region50: #{tpu_custom_call.1} parent=43 // pred_check_branch
          %326 = sbr.rel (%p324) target = $region52
        $region51: #{tpu_custom_call.1} parent=43 // pred_region
          %327 = dma.done %s320, 128
        $region52: #{tpu_custom_call.1} parent=43 // pred_fallthru
          _
        // Predicated region
        $region53: #{tpu_custom_call.1} parent=43 // pred_check
          %p328 = pneg %p100
        $region54: #{tpu_custom_call.1} parent=43 // pred_check_branch
          %330 = sbr.rel (%p328) target = $region56
        $region55: #{tpu_custom_call.1} parent=43 // pred_region
          %331 = dma.done [#allocation6], 2048
        $region56: #{tpu_custom_call.1} parent=43 // pred_fallthru
          _
        // Predicated region
        $region57: #{tpu_custom_call.1} parent=43 // pred_check
          %p332 = pneg %p142
        $region58: #{tpu_custom_call.1} parent=43 // pred_check_branch
          %334 = sbr.rel (%p332) target = $region60
        $region59: #{tpu_custom_call.1} parent=43 // pred_region
          %335 = dma.done [#allocation9], 1024
        $region60: #{tpu_custom_call.1} parent=43 // pred_fallthru
          _
        %s336 = sand.u32 %s40, 1
        %s337 = scalar_lea.sflag [#allocation3], %s336
        %s338 = sand.u32 %s40, 1
        %s339 = smul.addr %s338, 16
        %s340 = scalar_lea.vmem [#allocation2], %s339
        %p341 = pneg %p53
        %p342 = pneg %p50
        %s343 = sand.u32 %s32, 1
        %s344 = scalar_lea.sflag [#allocation6], %s343
        %s345 = sand.u32 %s66, 1
        %s346 = smul.addr %s345, 8
        %s347 = scalar_lea.vmem [#allocation5], %s346
        %p348 = pneg %p79
        %p349 = pneg %p76
        %p350 = pneg %p100
        %p351 = pneg %p97
        %p352 = pneg %p121
        %p353 = pneg %p118
        %p354 = pneg %p142
        %p355 = pneg %p139
        %p356 = pneg %p163
        %p357 = pneg %p160
        %p358 = pneg %p189
        %p359 = pneg %p186
        %s360 = sand.u32 %s176, 1
        %s361 = scalar_lea.sflag [#allocation4], %s360
        %s362 = sand.u32 %s176, 1
        %s363 = smul.addr %s362, 4
        %s364 = scalar_lea.vmem [#allocation10], %s363
        %p365 = pneg %p215
        %p366 = pneg %p212
        %s367 = sand.u32 %s202, 1
        %s368 = scalar_lea.sflag [#allocation12], %s367
        %s369 = sand.u32 %s202, 1
        %s370 = smul.addr %s369, 4
        %s371 = scalar_lea.vmem [#allocation11], %s370
        %v373 = vld [vmem:[%s314] sm:$0xff]
        %v374 = vld [vmem:[%s314 + $0x8] sm:$0xff]
        %v375 = vpack.c.bf16 %v373, %v373
        %v376 = vpack.c.bf16 %v374, %v374
        %v377 = vld [vmem:[#allocation7] sm:$0xf]
        %v378 = vld [vmem:[#allocation7 + $0x4] sm:$0xf]
        %v379 = vld [vmem:[#allocation7 + $0x8] sm:$0xf]
        %v380 = vld [vmem:[#allocation7 + $0xc] sm:$0xf]
        %v381 = vld [vmem:[#allocation7 + $0x10] sm:$0xf]
        %v382 = vld [vmem:[#allocation7 + $0x14] sm:$0xf]
        %v383 = vld [vmem:[#allocation7 + $0x18] sm:$0xf]
        %v384 = vld [vmem:[#allocation7 + $0x1c] sm:$0xf]
        %v385 = vld [vmem:[#allocation7 + $0x20] sm:$0xf]
        %v386 = vld [vmem:[#allocation7 + $0x24] sm:$0xf]
        %v387 = vld [vmem:[#allocation7 + $0x28] sm:$0xf]
        %v388 = vld [vmem:[#allocation7 + $0x2c] sm:$0xf]
        %v389 = vld [vmem:[#allocation7 + $0x30] sm:$0xf]
        %v390 = vld [vmem:[#allocation7 + $0x34] sm:$0xf]
        %v391 = vld [vmem:[#allocation7 + $0x38] sm:$0xf]
        %v392 = vld [vmem:[#allocation7 + $0x3c] sm:$0xf]
        %v393 = vld [vmem:[#allocation7 + $0x40] sm:$0xf]
        %v394 = vld [vmem:[#allocation7 + $0x44] sm:$0xf]
        %v395 = vld [vmem:[#allocation7 + $0x48] sm:$0xf]
        %v396 = vld [vmem:[#allocation7 + $0x4c] sm:$0xf]
        %v397 = vld [vmem:[#allocation7 + $0x50] sm:$0xf]
        %v398 = vld [vmem:[#allocation7 + $0x54] sm:$0xf]
        %v399 = vld [vmem:[#allocation7 + $0x58] sm:$0xf]
        %v400 = vld [vmem:[#allocation7 + $0x5c] sm:$0xf]
        %v401 = vld [vmem:[#allocation7 + $0x60] sm:$0xf]
        %v402 = vld [vmem:[#allocation7 + $0x64] sm:$0xf]
        %v403 = vld [vmem:[#allocation7 + $0x68] sm:$0xf]
        %v404 = vld [vmem:[#allocation7 + $0x6c] sm:$0xf]
        %v405 = vld [vmem:[#allocation7 + $0x70] sm:$0xf]
        %v406 = vld [vmem:[#allocation7 + $0x74] sm:$0xf]
        %v407 = vld [vmem:[#allocation7 + $0x78] sm:$0xf]
        %v408 = vld [vmem:[#allocation7 + $0x7c] sm:$0xf]
        %v409 = vld [vmem:[%s3] sm:$0x1]
        %v411 = vlaneseq
        %v412 = vshrl.u32 %v411, 7
        %v413 = vsub.s32 0, %v412
        %v414 = vrot.slane %v409, %v413
        %v448 = vunpack.c.l.b16 %v377
        %v449 = vunpack.c.l.b16 %v378
        %v450 = vunpack.c.l.b16 %v379
        %v451 = vunpack.c.l.b16 %v380
        %v452 = vunpack.c.l.b16 %v381
        %v453 = vunpack.c.l.b16 %v382
        %v454 = vunpack.c.l.b16 %v383
        %v455 = vunpack.c.l.b16 %v384
        %v456 = vunpack.c.l.b16 %v385
        %v457 = vunpack.c.l.b16 %v386
        %v458 = vunpack.c.l.b16 %v387
        %v459 = vunpack.c.l.b16 %v388
        %v460 = vunpack.c.l.b16 %v389
        %v461 = vunpack.c.l.b16 %v390
        %v462 = vunpack.c.l.b16 %v391
        %v463 = vunpack.c.l.b16 %v392
        %v464 = vunpack.c.l.b16 %v393
        %v465 = vunpack.c.l.b16 %v394
        %v466 = vunpack.c.l.b16 %v395
        %v467 = vunpack.c.l.b16 %v396
        %v468 = vunpack.c.l.b16 %v397
        %v469 = vunpack.c.l.b16 %v398
        %v470 = vunpack.c.l.b16 %v399
        %v471 = vunpack.c.l.b16 %v400
        %v472 = vunpack.c.l.b16 %v401
        %v473 = vunpack.c.l.b16 %v402
        %v474 = vunpack.c.l.b16 %v403
        %v475 = vunpack.c.l.b16 %v404
        %v476 = vunpack.c.l.b16 %v405
        %v477 = vunpack.c.l.b16 %v406
        %v478 = vunpack.c.l.b16 %v407
        %v479 = vunpack.c.l.b16 %v408
        %v480 = vpack.c.b16 %v449, %v448
        %v481 = vpack.c.b16 %v451, %v450
        %v482 = vpack.c.b16 %v453, %v452
        %v483 = vpack.c.b16 %v455, %v454
        %v484 = vpack.c.b16 %v457, %v456
        %v485 = vpack.c.b16 %v459, %v458
        %v486 = vpack.c.b16 %v461, %v460
        %v487 = vpack.c.b16 %v463, %v462
        %v488 = vpack.c.b16 %v465, %v464
        %v489 = vpack.c.b16 %v467, %v466
        %v490 = vpack.c.b16 %v469, %v468
        %v491 = vpack.c.b16 %v471, %v470
        %v492 = vpack.c.b16 %v473, %v472
        %v493 = vpack.c.b16 %v475, %v474
        %v494 = vpack.c.b16 %v477, %v476
        %v495 = vpack.c.b16 %v479, %v478
        %512 = vmatprep.subr.bf16.mxu0 0
        %513 = vmatpush1.bf16.msra.mxu0 %v480
        %514 = vmatprep.subr.bf16.mxu0 0
        %515 = vmatpush1.bf16.msra.mxu0 %v481
        %516 = vmatprep.subr.bf16.mxu0 0
        %517 = vmatpush1.bf16.msra.mxu0 %v482
        %518 = vmatprep.subr.bf16.mxu0 0
        %519 = vmatpush1.bf16.msra.mxu0 %v483
        %520 = vmatprep.subr.bf16.mxu0 0
        %521 = vmatpush1.bf16.msra.mxu0 %v484
        %522 = vmatprep.subr.bf16.mxu0 0
        %523 = vmatpush1.bf16.msra.mxu0 %v485
        %524 = vmatprep.subr.bf16.mxu0 0
        %525 = vmatpush1.bf16.msra.mxu0 %v486
        %526 = vmatprep.subr.bf16.mxu0 0
        %527 = vmatpush1.bf16.msra.mxu0 %v487
        %528 = vmatprep.subr.bf16.mxu0 0
        %529 = vmatpush1.bf16.msra.mxu0 %v488
        %530 = vmatprep.subr.bf16.mxu0 0
        %531 = vmatpush1.bf16.msra.mxu0 %v489
        %532 = vmatprep.subr.bf16.mxu0 0
        %533 = vmatpush1.bf16.msra.mxu0 %v490
        %534 = vmatprep.subr.bf16.mxu0 0
        %535 = vmatpush1.bf16.msra.mxu0 %v491
        %536 = vmatprep.subr.bf16.mxu0 0
        %537 = vmatpush1.bf16.msra.mxu0 %v492
        %538 = vmatprep.subr.bf16.mxu0 0
        %539 = vmatpush1.bf16.msra.mxu0 %v493
        %540 = vmatprep.subr.bf16.mxu0 0
        %541 = vmatpush1.bf16.msra.mxu0 %v494
        %542 = vmatprep.subr.bf16.mxu0 0
        %543 = vmatpush1.bf16.msra.mxu0 %v495
        %544 = vmatprep.mubr.bf16.mxu0 %v376
        %545 = vmatmul.mubr.bf16.gmra.mrb[0].mxu0 %v375
        %v546 = vpop.f32.mrb[0].mxu0
        %v547 = vadd.f32 %v414, %v546
        %v548 = vpop.f32.mrb[0].mxu0
        %v549 = vpop.f32.mrb[0].mxu0
        %v550 = vpop.f32.mrb[0].mxu0
        %551 = vdwg.mxu0
        %v552 = vmul.f32 %v547, %v547
        %553 = vadd.xlane.f32.xlu0 %v552
        %v554 = vpop.xlane.xlu0 %553
        %v555 = vadd.f32 %v554, 1e-12
        %v556 = vrsqrt.pop %v555
        %v557 = vmul.f32 %v547, %v556
        %v558 = vpack.c.bf16 %v557, %v557
        %559 = vst [vmem:[%s364] sm:$0xf] %v558
        %v560 = vld [vmem:[%s323] sm:$0xff]
        %v561 = vpack.c.bf16 %v560, %v560
        %v562 = vld [vmem:[#allocation8] sm:$0xf]
        %v563 = vld [vmem:[#allocation8 + $0x4] sm:$0xf]
        %v564 = vld [vmem:[#allocation8 + $0x8] sm:$0xf]
        %v565 = vld [vmem:[#allocation8 + $0xc] sm:$0xf]
        %v566 = vld [vmem:[#allocation8 + $0x10] sm:$0xf]
        %v567 = vld [vmem:[#allocation8 + $0x14] sm:$0xf]
        %v568 = vld [vmem:[#allocation8 + $0x18] sm:$0xf]
        %v569 = vld [vmem:[#allocation8 + $0x1c] sm:$0xf]
        %v570 = vld [vmem:[#allocation8 + $0x20] sm:$0xf]
        %v571 = vld [vmem:[#allocation8 + $0x24] sm:$0xf]
        %v572 = vld [vmem:[#allocation8 + $0x28] sm:$0xf]
        %v573 = vld [vmem:[#allocation8 + $0x2c] sm:$0xf]
        %v574 = vld [vmem:[#allocation8 + $0x30] sm:$0xf]
        %v575 = vld [vmem:[#allocation8 + $0x34] sm:$0xf]
        %v576 = vld [vmem:[#allocation8 + $0x38] sm:$0xf]
        %v577 = vld [vmem:[#allocation8 + $0x3c] sm:$0xf]
        %v578 = vld [vmem:[%s5] sm:$0x1]
        %v580 = vlaneseq
        %v581 = vshrl.u32 %v580, 7
        %v582 = vsub.s32 0, %v581
        %v583 = vrot.slane %v578, %v582
        %v601 = vunpack.c.l.b16 %v562
        %v602 = vunpack.c.l.b16 %v563
        %v603 = vunpack.c.l.b16 %v564
        %v604 = vunpack.c.l.b16 %v565
        %v605 = vunpack.c.l.b16 %v566
        %v606 = vunpack.c.l.b16 %v567
        %v607 = vunpack.c.l.b16 %v568
        %v608 = vunpack.c.l.b16 %v569
        %v609 = vunpack.c.l.b16 %v570
        %v610 = vunpack.c.l.b16 %v571
        %v611 = vunpack.c.l.b16 %v572
        %v612 = vunpack.c.l.b16 %v573
        %v613 = vunpack.c.l.b16 %v574
        %v614 = vunpack.c.l.b16 %v575
        %v615 = vunpack.c.l.b16 %v576
        %v616 = vunpack.c.l.b16 %v577
        %v617 = vpack.c.b16 %v602, %v601
        %v618 = vpack.c.b16 %v604, %v603
        %v619 = vpack.c.b16 %v606, %v605
        %v620 = vpack.c.b16 %v608, %v607
        %v621 = vpack.c.b16 %v610, %v609
        %v622 = vpack.c.b16 %v612, %v611
        %v623 = vpack.c.b16 %v614, %v613
        %v624 = vpack.c.b16 %v616, %v615
        %633 = vmatprep.subr.bf16.mxu0 0
        %634 = vmatpush1.bf16.msra.mxu0 %v617
        %635 = vmatprep.subr.bf16.mxu0 0
        %636 = vmatpush1.bf16.msra.mxu0 %v618
        %637 = vmatprep.subr.bf16.mxu0 0
        %638 = vmatpush1.bf16.msra.mxu0 %v619
        %639 = vmatprep.subr.bf16.mxu0 0
        %640 = vmatpush1.bf16.msra.mxu0 %v620
        %641 = vmatprep.subr.bf16.mxu0 0
        %642 = vmatpush1.bf16.msra.mxu0 %v621
        %643 = vmatprep.subr.bf16.mxu0 0
        %644 = vmatpush1.bf16.msra.mxu0 %v622
        %645 = vmatprep.subr.bf16.mxu0 0
        %646 = vmatpush1.bf16.msra.mxu0 %v623
        %647 = vmatprep.subr.bf16.mxu0 0
        %648 = vmatpush1.bf16.msra.mxu0 %v624
        %649 = vmatprep.subr.bf16.mxu0 0
        %650 = vmatpush1.bf16.msra.mxu0 0
        %651 = vmatprep.subr.bf16.mxu0 0
        %652 = vmatpush1.bf16.msra.mxu0 0
        %653 = vmatprep.subr.bf16.mxu0 0
        %654 = vmatpush1.bf16.msra.mxu0 0
        %655 = vmatprep.subr.bf16.mxu0 0
        %656 = vmatpush1.bf16.msra.mxu0 0
        %657 = vmatprep.subr.bf16.mxu0 0
        %658 = vmatpush1.bf16.msra.mxu0 0
        %659 = vmatprep.subr.bf16.mxu0 0
        %660 = vmatpush1.bf16.msra.mxu0 0
        %661 = vmatprep.subr.bf16.mxu0 0
        %662 = vmatpush1.bf16.msra.mxu0 0
        %663 = vmatprep.subr.bf16.mxu0 0
        %664 = vmatpush1.bf16.msra.mxu0 0
        %665 = vmatprep.mubr.bf16.mxu0 0
        %666 = vmatmul.mubr.bf16.gmra.mrb[0].mxu0 %v561
        %v667 = vpop.f32.mrb[0].mxu0
        %v668 = vadd.f32 %v583, %v667
        %v669 = vpop.f32.mrb[0].mxu0
        %v670 = vpop.f32.mrb[0].mxu0
        %v671 = vpop.f32.mrb[0].mxu0
        %672 = vdwg.mxu0
        %v673 = vmul.f32 %v668, %v668
        %674 = vadd.xlane.f32.xlu0 %v673
        %v675 = vpop.xlane.xlu0 %674
        %v676 = vadd.f32 %v675, 1e-12
        %v677 = vrsqrt.pop %v676
        %v678 = vmul.f32 %v668, %v677
        %v679 = vpack.c.bf16 %v678, %v678
        %680 = vst [vmem:[%s371] sm:$0xf] %v679
        %s681 = sand.u32 %s176, 1
        %s682 = scalar_lea.sflag [#allocation4], %s681
        %s683 = sand.u32 %s176, 1
        %s684 = smul.addr %s683, 4
        %s685 = scalar_lea.vmem [#allocation10], %s684
        %s686 = sand.u32 %s202, 1
        %s687 = scalar_lea.sflag [#allocation12], %s686
        %s688 = sand.u32 %s202, 1
        %s689 = smul.addr %s688, 4
        %s690 = scalar_lea.vmem [#allocation11], %s689
        // Predicated region
        $region61: #{tpu_custom_call.1} parent=43 // pred_check
          %p691 = pneg %p186
        $region62: #{tpu_custom_call.1} parent=43 // pred_check_branch
          %693 = sbr.rel (%p691) target = $region64
        $region63: #{tpu_custom_call.1} parent=43 // pred_region
          %s695 = ssub.s32 64, 64
          %696 = vsyncadd %s682, %s695
          %s697 = smul.addr %s32, 64
          %s698 = scalar_lea.hbm %s6, %s697
          %s700 = sshll.u32 %s685, 4
          %s701 = int_to_ptr.vmem [resolvable:$true] %s700
          %703 = dma.vmem_to_hbm [thread:$0]  %s701, 64, %s698, %s682
        $region64: #{tpu_custom_call.1} parent=43 // pred_fallthru
          _
        // Predicated region
        $region65: #{tpu_custom_call.1} parent=43 // pred_check
          %p704 = pneg %p212
        $region66: #{tpu_custom_call.1} parent=43 // pred_check_branch
          %706 = sbr.rel (%p704) target = $region68
        $region67: #{tpu_custom_call.1} parent=43 // pred_region
          %s708 = ssub.s32 64, 64
          %709 = vsyncadd %s687, %s708
          %s710 = smul.addr %s32, 64
          %s711 = scalar_lea.hbm %s7, %s710
          %s713 = sshll.u32 %s690, 4
          %s714 = int_to_ptr.vmem [resolvable:$true] %s713
          %716 = dma.vmem_to_hbm [thread:$0]  %s714, 64, %s711, %s687
        $region68: #{tpu_custom_call.1} parent=43 // pred_fallthru
          _
      $region44: #{tpu_custom_call.1} parent=5 // pred_fallthru
        _
      %p717 = scmp.le.s32.totalorder 2, %s27
      // Predicated region
      $region69: #{tpu_custom_call.1} parent=5 // pred_check
        %p718 = pneg %p717
      $region70: #{tpu_custom_call.1} parent=5 // pred_check_branch
        %720 = sbr.rel (%p718) target = $region72
      $region71: #{tpu_custom_call.1} parent=5 // pred_region
        %s721 = ssub.s32 %s27, 2
        // Predicated region
        $region73: #{tpu_custom_call.1} parent=71 // pred_check
          %p722 = pneg %p192
        $region74: #{tpu_custom_call.1} parent=71 // pred_check_branch
          %724 = sbr.rel (%p722) target = $region76
        $region75: #{tpu_custom_call.1} parent=71 // pred_region
          %s725 = sand.u32 %s177, 1
          %s726 = scalar_lea.sflag [#allocation4], %s725
          %s727 = sand.u32 %s177, 1
          %s728 = smul.addr %s727, 4
          %s729 = scalar_lea.vmem [#allocation10], %s728
          %730 = dma.done %s726, 64
        $region76: #{tpu_custom_call.1} parent=71 // pred_fallthru
          _
        // Predicated region
        $region77: #{tpu_custom_call.1} parent=71 // pred_check
          %p731 = pneg %p218
        $region78: #{tpu_custom_call.1} parent=71 // pred_check_branch
          %733 = sbr.rel (%p731) target = $region80
        $region79: #{tpu_custom_call.1} parent=71 // pred_region
          %s734 = sand.u32 %s203, 1
          %s735 = scalar_lea.sflag [#allocation12], %s734
          %s736 = sand.u32 %s203, 1
          %s737 = smul.addr %s736, 4
          %s738 = scalar_lea.vmem [#allocation11], %s737
          %739 = dma.done %s735, 64
        $region80: #{tpu_custom_call.1} parent=71 // pred_fallthru
          _
      $region72: #{tpu_custom_call.1} parent=5 // pred_fallthru
        _
    $region6: #{tpu_custom_call.1} parent=1 // loop_footer
      %s31 = sadd.s32 1, %s27
    $region7: #{tpu_custom_call.1} parent=1 // loop_footer_branch
      %26 = sbr.rel target = $region3
    $region8: #{tpu_custom_call.1} parent=1 // loop_exit
      _
    %740 = vsyncpa [#allocation3], 1
    %s741 = scalar_lea.sflag [#allocation3], 1
    %742 = vsyncpa %s741, 1
    %743 = vsyncpa [#allocation6], 1
    %s744 = scalar_lea.sflag [#allocation6], 1
    %745 = vsyncpa %s744, 1
    %746 = vsyncpa [#allocation9], 1
    %747 = vsyncpa [#allocation4], 1
    %s748 = scalar_lea.sflag [#allocation4], 1
    %749 = vsyncpa %s748, 1
    %750 = vsyncpa [#allocation12], 1
    %s751 = scalar_lea.sflag [#allocation12], 1
    %752 = vsyncpa %s751, 1

// kernel: tpu_custom_call.1
$region0: #{tpu_custom_call.1}
  #allocation0 [shape = 'u32[]', space=smem, size = 0x4, offset = 0x4, fixed_abs, tag = 'smem constant byte address 0x4 - core index']
  #allocation1 [shape = 'u32[144,128]{1,0:T(1,128)}', space=vmem, size = 0x12000, scoped, tag = 'internal scratch']
  %s0 = inlined_call_operand.hbm [shape: f32[16,256], index: 0, kind: input, shape index: {}]
  %s1 = inlined_call_operand.hbm [shape: f32[16,128], index: 1, kind: input, shape index: {}]
  %s2 = inlined_call_operand.hbm [shape: bf16[256,128], index: 2, kind: input, shape index: {}]
  %s3 = inlined_call_operand.vmem [shape: f32[1,128], index: 3, kind: input, shape index: {}]
  %s4 = inlined_call_operand.hbm [shape: bf16[128,128], index: 4, kind: input, shape index: {}]
  %s5 = inlined_call_operand.vmem [shape: f32[1,128], index: 5, kind: input, shape index: {}]
  %s6 = inlined_call_operand.hbm [shape: bf16[16,128], index: 6, kind: output, shape index: {0}]
  %s7 = inlined_call_operand.hbm [shape: bf16[16,128], index: 7, kind: output, shape index: {1}]
  %8 = xla_tuple %s6, %s7
  %s9 = sld [smem:[#allocation0]]
  $region81: #{tpu_custom_call.1} parent=0
    _
  %s11 = ssub.s32 1, %s9
  %s12 = scalar_select 0, %s11, %s9
  $region1: #{tpu_custom_call.1} parent=0
    #allocation2 [shape = 'u8[16384]{0}', space=vmem, size = 0x4000, scoped, tag = 'input window, operand 0']
    #allocation3 [shape = 's32[2]{0}', space=sflag, size = 0x8, scoped, tag = 'scoped memory for tpu_custom_call.1']
    #allocation4 [shape = 's32[2]{0}', space=sflag, size = 0x8, scoped, tag = 'scoped memory for tpu_custom_call.1']
    #allocation5 [shape = 'u8[8192]{0}', space=vmem, size = 0x2000, scoped, tag = 'input window, operand 1']
    #allocation6 [shape = 's32[2]{0}', space=sflag, size = 0x8, scoped, tag = 'scoped memory for tpu_custom_call.1']
    #allocation7 [shape = 'u8[65536]{0}', space=vmem, size = 0x10000, scoped, tag = 'input window, operand 2, single buffered']
    #allocation8 [shape = 'u8[32768]{0}', space=vmem, size = 0x8000, scoped, tag = 'input window, operand 4, single buffered']
    #allocation9 [shape = 's32[1]{0}', space=sflag, size = 0x4, scoped, tag = 'scoped memory for tpu_custom_call.1']
    #allocation10 [shape = 'u8[4096]{0}', space=vmem, size = 0x1000, scoped, tag = 'output window, operand 0']
    #allocation11 [shape = 'u8[4096]{0}', space=vmem, size = 0x1000, scoped, tag = 'output window, operand 1']
    #allocation12 [shape = 's32[2]{0}', space=sflag, size = 0x8, scoped, tag = 'scoped memory for tpu_custom_call.1']
    %13 = vsyncpa [#allocation3], 0
    %s14 = scalar_lea.sflag [#allocation3], 1
    %15 = vsyncpa %s14, 0
    %16 = vsyncpa [#allocation6], 0
    %s17 = scalar_lea.sflag [#allocation6], 1
    %18 = vsyncpa %s17, 0
    %19 = vsyncpa [#allocation9], 0
    %20 = vsyncpa [#allocation4], 0
    %s21 = scalar_lea.sflag [#allocation4], 1
    %22 = vsyncpa %s21, 0
    %23 = vsyncpa [#allocation12], 0
    %s24 = scalar_lea.sflag [#allocation12], 1
    %25 = vsyncpa %s24, 0
    loop: start=0, step=1, limit=4
    $region2: #{tpu_custom_call.1} parent=1 // loop_pre_header
      _
    $region3: #{tpu_custom_call.1} parent=1 // loop_header
      %s27 = sphi 0, %s31
      %p28 = scmp.ge.s32.totalorder %s27, 4
      %s37 = sphi 0, %s39
      %s40 = sphi 0, %s37
      %s41 = sphi 0, %s40
      %s57 = sphi 0, %s41
      %s63 = sphi 0, %s65
      %s66 = sphi 0, %s63
      %s67 = sphi 0, %s66
      %s83 = sphi 0, %s67
      %s87 = sphi 0, %s87
      %s89 = sphi 0, %s87
      %s90 = sphi 0, %s89
      %s104 = sphi 0, %s90
      %s108 = sphi 0, %s108
      %s110 = sphi 0, %s108
      %s111 = sphi 0, %s110
      %s125 = sphi 0, %s111
      %s129 = sphi 0, %s129
      %s131 = sphi 0, %s129
      %s132 = sphi 0, %s131
      %s146 = sphi 0, %s132
      %s150 = sphi 0, %s150
      %s152 = sphi 0, %s150
      %s153 = sphi 0, %s152
      %s167 = sphi 0, %s153
      %s173 = sphi 0, %s175
      %s176 = sphi 0, %s173
      %s177 = sphi 0, %s176
      %s193 = sphi 0, %s177
      %s199 = sphi 0, %s201
      %s202 = sphi 0, %s199
      %s203 = sphi 0, %s202
      %s219 = sphi 0, %s203
    $region4: #{tpu_custom_call.1} parent=1 // loop_header_branch
      %30 = sbr.rel (%p28) target = $region8
    $region5: #{tpu_custom_call.1} parent=1 // loop_body
      %s32 = ssub.s32 %s27, 1
      %s33 = ssub.s32 %s27, 2
      %s34 = sadd.s32 %s27, 1
      %s35 = ssub.s32 %s27, %s34
      %p36 = scmp.eq.s32.totalorder %s35, 0
      %s38 = sadd.s32 %s37, 1
      %s39 = scalar_select %p36, %s37, %s38
      %p42 = pneg %p36
      %p43 = scmp.eq.s32.totalorder %s27, 1
      %p44 = por %p42, %p43
      %p45 = scmp.ne.s32.totalorder %s37, %s40
      %p46 = scmp.eq.s32.totalorder %s27, 0
      %p47 = por %p45, %p46
      %p48 = scmp.ne.s32.totalorder %s37, %s40
      %p49 = scmp.eq.s32.totalorder %s32, 1
      %p50 = por %p48, %p49
      %p51 = scmp.ne.s32.totalorder %s40, %s41
      %p52 = scmp.eq.s32.totalorder %s32, 0
      %p53 = por %p51, %p52
      %p54 = scmp.ne.s32.totalorder %s40, %s41
      %p55 = scmp.eq.s32.totalorder %s33, 1
      %p56 = por %p54, %p55
      %p58 = scmp.ne.s32.totalorder %s41, %s57
      %p59 = scmp.eq.s32.totalorder %s33, 0
      %p60 = por %p58, %p59
      %s61 = ssub.s32 %s27, %s34
      %p62 = scmp.eq.s32.totalorder %s61, 0
      %s64 = sadd.s32 %s63, 1
      %s65 = scalar_select %p62, %s63, %s64
      %p68 = pneg %p62
      %p69 = scmp.eq.s32.totalorder %s27, 1
      %p70 = por %p68, %p69
      %p71 = scmp.ne.s32.totalorder %s63, %s66
      %p72 = scmp.eq.s32.totalorder %s27, 0
      %p73 = por %p71, %p72
      %p74 = scmp.ne.s32.totalorder %s63, %s66
      %p75 = scmp.eq.s32.totalorder %s32, 1
      %p76 = por %p74, %p75
      %p77 = scmp.ne.s32.totalorder %s66, %s67
      %p78 = scmp.eq.s32.totalorder %s32, 0
      %p79 = por %p77, %p78
      %p80 = scmp.ne.s32.totalorder %s66, %s67
      %p81 = scmp.eq.s32.totalorder %s33, 1
      %p82 = por %p80, %p81
      %p84 = scmp.ne.s32.totalorder %s67, %s83
      %p85 = scmp.eq.s32.totalorder %s33, 0
      %p86 = por %p84, %p85
      %s88 = sadd.s32 %s87, 1
      %p91 = scmp.eq.s32.totalorder %s27, 1
      %p92 = scmp.ne.s32.totalorder %s87, %s89
      %p93 = scmp.eq.s32.totalorder %s27, 0
      %p94 = por %p92, %p93
      %p95 = scmp.ne.s32.totalorder %s87, %s89
      %p96 = scmp.eq.s32.totalorder %s32, 1
      %p97 = por %p95, %p96
      %p98 = scmp.ne.s32.totalorder %s89, %s90
      %p99 = scmp.eq.s32.totalorder %s32, 0
      %p100 = por %p98, %p99
      %p101 = scmp.ne.s32.totalorder %s89, %s90
      %p102 = scmp.eq.s32.totalorder %s33, 1
      %p103 = por %p101, %p102
      %p105 = scmp.ne.s32.totalorder %s90, %s104
      %p106 = scmp.eq.s32.totalorder %s33, 0
      %p107 = por %p105, %p106
      %s109 = sadd.s32 %s108, 1
      %p112 = scmp.eq.s32.totalorder %s27, 1
      %p113 = scmp.ne.s32.totalorder %s108, %s110
      %p114 = scmp.eq.s32.totalorder %s27, 0
      %p115 = por %p113, %p114
      %p116 = scmp.ne.s32.totalorder %s108, %s110
      %p117 = scmp.eq.s32.totalorder %s32, 1
      %p118 = por %p116, %p117
      %p119 = scmp.ne.s32.totalorder %s110, %s111
      %p120 = scmp.eq.s32.totalorder %s32, 0
      %p121 = por %p119, %p120
      %p122 = scmp.ne.s32.totalorder %s110, %s111
      %p123 = scmp.eq.s32.totalorder %s33, 1
      %p124 = por %p122, %p123
      %p126 = scmp.ne.s32.totalorder %s111, %s125
      %p127 = scmp.eq.s32.totalorder %s33, 0
      %p128 = por %p126, %p127
      %s130 = sadd.s32 %s129, 1
      %p133 = scmp.eq.s32.totalorder %s27, 1
      %p134 = scmp.ne.s32.totalorder %s129, %s131
      %p135 = scmp.eq.s32.totalorder %s27, 0
      %p136 = por %p134, %p135
      %p137 = scmp.ne.s32.totalorder %s129, %s131
      %p138 = scmp.eq.s32.totalorder %s32, 1
      %p139 = por %p137, %p138
      %p140 = scmp.ne.s32.totalorder %s131, %s132
      %p141 = scmp.eq.s32.totalorder %s32, 0
      %p142 = por %p140, %p141
      %p143 = scmp.ne.s32.totalorder %s131, %s132
      %p144 = scmp.eq.s32.totalorder %s33, 1
      %p145 = por %p143, %p144
      %p147 = scmp.ne.s32.totalorder %s132, %s146
      %p148 = scmp.eq.s32.totalorder %s33, 0
      %p149 = por %p147, %p148
      %s151 = sadd.s32 %s150, 1
      %p154 = scmp.eq.s32.totalorder %s27, 1
      %p155 = scmp.ne.s32.totalorder %s150, %s152
      %p156 = scmp.eq.s32.totalorder %s27, 0
      %p157 = por %p155, %p156
      %p158 = scmp.ne.s32.totalorder %s150, %s152
      %p159 = scmp.eq.s32.totalorder %s32, 1
      %p160 = por %p158, %p159
      %p161 = scmp.ne.s32.totalorder %s152, %s153
      %p162 = scmp.eq.s32.totalorder %s32, 0
      %p163 = por %p161, %p162
      %p164 = scmp.ne.s32.totalorder %s152, %s153
      %p165 = scmp.eq.s32.totalorder %s33, 1
      %p166 = por %p164, %p165
      %p168 = scmp.ne.s32.totalorder %s153, %s167
      %p169 = scmp.eq.s32.totalorder %s33, 0
      %p170 = por %p168, %p169
      %s171 = ssub.s32 %s27, %s34
      %p172 = scmp.eq.s32.totalorder %s171, 0
      %s174 = sadd.s32 %s173, 1
      %s175 = scalar_select %p172, %s173, %s174
      %p178 = pneg %p172
      %p179 = scmp.eq.s32.totalorder %s27, 1
      %p180 = por %p178, %p179
      %p181 = scmp.ne.s32.totalorder %s173, %s176
      %p182 = scmp.eq.s32.totalorder %s27, 0
      %p183 = por %p181, %p182
      %p184 = scmp.ne.s32.totalorder %s173, %s176
      %p185 = scmp.eq.s32.totalorder %s32, 1
      %p186 = por %p184, %p185
      %p187 = scmp.ne.s32.totalorder %s176, %s177
      %p188 = scmp.eq.s32.totalorder %s32, 0
      %p189 = por %p187, %p188
      %p190 = scmp.ne.s32.totalorder %s176, %s177
      %p191 = scmp.eq.s32.totalorder %s33, 1
      %p192 = por %p190, %p191
      %p194 = scmp.ne.s32.totalorder %s177, %s193
      %p195 = scmp.eq.s32.totalorder %s33, 0
      %p196 = por %p194, %p195
      %s197 = ssub.s32 %s27, %s34
      %p198 = scmp.eq.s32.totalorder %s197, 0
      %s200 = sadd.s32 %s199, 1
      %s201 = scalar_select %p198, %s199, %s200
      %p204 = pneg %p198
      %p205 = scmp.eq.s32.totalorder %s27, 1
      %p206 = por %p204, %p205
      %p207 = scmp.ne.s32.totalorder %s199, %s202
      %p208 = scmp.eq.s32.totalorder %s27, 0
      %p209 = por %p207, %p208
      %p210 = scmp.ne.s32.totalorder %s199, %s202
      %p211 = scmp.eq.s32.totalorder %s32, 1
      %p212 = por %p210, %p211
      %p213 = scmp.ne.s32.totalorder %s202, %s203
      %p214 = scmp.eq.s32.totalorder %s32, 0
      %p215 = por %p213, %p214
      %p216 = scmp.ne.s32.totalorder %s202, %s203
      %p217 = scmp.eq.s32.totalorder %s33, 1
      %p218 = por %p216, %p217
      %p220 = scmp.ne.s32.totalorder %s203, %s219
      %p221 = scmp.eq.s32.totalorder %s33, 0
      %p222 = por %p220, %p221
      %p223 = scmp.le.s32.totalorder 1, %s27
      %p224 = scmp.lt.s32.totalorder %s27, 3
      %p225 = pnand %p223, %p224
      %p226 = pneg %p225
      // Predicated region
      $region9: #{tpu_custom_call.1} parent=5 // pred_check
        _
      $region10: #{tpu_custom_call.1} parent=5 // pred_check_branch
        %228 = sbr.rel (%p225) target = $region12
      $region11: #{tpu_custom_call.1} parent=5 // pred_region
        %s229 = ssub.s32 %s27, 1
        // Predicated region
        $region13: #{tpu_custom_call.1} parent=11 // pred_check
          %p230 = pneg %p100
        $region14: #{tpu_custom_call.1} parent=11 // pred_check_branch
          %232 = sbr.rel (%p230) target = $region16
        $region15: #{tpu_custom_call.1} parent=11 // pred_region
          %s234 = ssub.s32 2048, 2048
          %235 = vsyncadd [#allocation6], %s234
          %s236 = sshll.u32 [#allocation7], 4
          %s237 = int_to_ptr.vmem [resolvable:$true] %s236
          %242 = dma.hbm_to_vmem [thread:$0]  %s2, 2048, %s237, [#allocation6], 64, 64, 4
        $region16: #{tpu_custom_call.1} parent=11 // pred_fallthru
          _
        // Predicated region
        $region17: #{tpu_custom_call.1} parent=11 // pred_check
          %p243 = pneg %p121
        $region18: #{tpu_custom_call.1} parent=11 // pred_check_branch
          %245 = sbr.rel (%p243) target = $region20
        $region19: #{tpu_custom_call.1} parent=11 // pred_region
          _
        $region20: #{tpu_custom_call.1} parent=11 // pred_fallthru
          _
        // Predicated region
        $region21: #{tpu_custom_call.1} parent=11 // pred_check
          %p246 = pneg %p142
        $region22: #{tpu_custom_call.1} parent=11 // pred_check_branch
          %248 = sbr.rel (%p246) target = $region24
        $region23: #{tpu_custom_call.1} parent=11 // pred_region
          %s250 = ssub.s32 1024, 1024
          %251 = vsyncadd [#allocation9], %s250
          %s252 = sshll.u32 [#allocation8], 4
          %s253 = int_to_ptr.vmem [resolvable:$true] %s252
          %258 = dma.hbm_to_vmem [thread:$0]  %s4, 1024, %s253, [#allocation9], 64, 64, 4
        $region24: #{tpu_custom_call.1} parent=11 // pred_fallthru
          _
        // Predicated region
        $region25: #{tpu_custom_call.1} parent=11 // pred_check
          %p259 = pneg %p163
        $region26: #{tpu_custom_call.1} parent=11 // pred_check_branch
          %261 = sbr.rel (%p259) target = $region28
        $region27: #{tpu_custom_call.1} parent=11 // pred_region
          _
        $region28: #{tpu_custom_call.1} parent=11 // pred_fallthru
          _
      $region12: #{tpu_custom_call.1} parent=5 // pred_fallthru
        _
      %p262 = scmp.lt.s32.totalorder %s27, 2
      // Predicated region
      $region29: #{tpu_custom_call.1} parent=5 // pred_check
        %p263 = pneg %p262
      $region30: #{tpu_custom_call.1} parent=5 // pred_check_branch
        %265 = sbr.rel (%p263) target = $region32
      $region31: #{tpu_custom_call.1} parent=5 // pred_region
        // Predicated region
        $region33: #{tpu_custom_call.1} parent=31 // pred_check
          %p266 = pneg %p47
        $region34: #{tpu_custom_call.1} parent=31 // pred_check_branch
          %268 = sbr.rel (%p266) target = $region36
        $region35: #{tpu_custom_call.1} parent=31 // pred_region
          %s269 = sand.u32 %s37, 1
          %s270 = scalar_lea.sflag [#allocation3], %s269
          %s271 = sand.u32 %s37, 1
          %s272 = smul.addr %s271, 16
          %s273 = scalar_lea.vmem [#allocation2], %s272
          %s275 = ssub.s32 256, 256
          %276 = vsyncadd %s270, %s275
          %s277 = smul.addr %s27, 2
          %s278 = smul.addr %s277, 128
          %s279 = scalar_lea.hbm %s0, %s278
          %s281 = sshll.u32 %s273, 4
          %s282 = int_to_ptr.vmem [resolvable:$true] %s281
          %284 = dma.hbm_to_vmem [thread:$0]  %s279, 256, %s282, %s270
        $region36: #{tpu_custom_call.1} parent=31 // pred_fallthru
          _
        // Predicated region
        $region37: #{tpu_custom_call.1} parent=31 // pred_check
          %p285 = pneg %p73
        $region38: #{tpu_custom_call.1} parent=31 // pred_check_branch
          %287 = sbr.rel (%p285) target = $region40
        $region39: #{tpu_custom_call.1} parent=31 // pred_region
          %s288 = sand.u32 %s27, 1
          %s289 = scalar_lea.sflag [#allocation6], %s288
          %s290 = sand.u32 %s63, 1
          %s291 = smul.addr %s290, 8
          %s292 = scalar_lea.vmem [#allocation5], %s291
          %s294 = ssub.s32 128, 128
          %295 = vsyncadd %s289, %s294
          %s296 = smul.addr %s27, 128
          %s297 = scalar_lea.hbm %s1, %s296
          %s299 = sshll.u32 %s292, 4
          %s300 = int_to_ptr.vmem [resolvable:$true] %s299
          %302 = dma.hbm_to_vmem [thread:$0]  %s297, 128, %s300, %s289
        $region40: #{tpu_custom_call.1} parent=31 // pred_fallthru
          _
      $region32: #{tpu_custom_call.1} parent=5 // pred_fallthru
        _
      %p303 = scmp.le.s32.totalorder 1, %s27
      %p304 = scmp.lt.s32.totalorder %s27, 3
      %p305 = pnand %p303, %p304
      %p306 = pneg %p305
      // Predicated region
      $region41: #{tpu_custom_call.1} parent=5 // pred_check
        _
      $region42: #{tpu_custom_call.1} parent=5 // pred_check_branch
        %308 = sbr.rel (%p305) target = $region44
      $region43: #{tpu_custom_call.1} parent=5 // pred_region
        %s309 = ssub.s32 %s27, 1
        %s310 = sand.u32 %s40, 1
        %s311 = scalar_lea.sflag [#allocation3], %s310
        %s312 = sand.u32 %s40, 1
        %s313 = smul.addr %s312, 16
        %s314 = scalar_lea.vmem [#allocation2], %s313
        // Predicated region
        $region45: #{tpu_custom_call.1} parent=43 // pred_check
          %p315 = pneg %p53
        $region46: #{tpu_custom_call.1} parent=43 // pred_check_branch
          %317 = sbr.rel (%p315) target = $region48
        $region47: #{tpu_custom_call.1} parent=43 // pred_region
          %318 = dma.done %s311, 256
        $region48: #{tpu_custom_call.1} parent=43 // pred_fallthru
          _
        %s319 = sand.u32 %s32, 1
        %s320 = scalar_lea.sflag [#allocation6], %s319
        %s321 = sand.u32 %s66, 1
        %s322 = smul.addr %s321, 8
        %s323 = scalar_lea.vmem [#allocation5], %s322
        // Predicated region
        $region49: #{tpu_custom_call.1} parent=43 // pred_check
          %p324 = pneg %p79
        $region50: #{tpu_custom_call.1} parent=43 // pred_check_branch
          %326 = sbr.rel (%p324) target = $region52
        $region51: #{tpu_custom_call.1} parent=43 // pred_region
          %327 = dma.done %s320, 128
        $region52: #{tpu_custom_call.1} parent=43 // pred_fallthru
          _
        // Predicated region
        $region53: #{tpu_custom_call.1} parent=43 // pred_check
          %p328 = pneg %p100
        $region54: #{tpu_custom_call.1} parent=43 // pred_check_branch
          %330 = sbr.rel (%p328) target = $region56
        $region55: #{tpu_custom_call.1} parent=43 // pred_region
          %331 = dma.done [#allocation6], 2048
        $region56: #{tpu_custom_call.1} parent=43 // pred_fallthru
          _
        // Predicated region
        $region57: #{tpu_custom_call.1} parent=43 // pred_check
          %p332 = pneg %p142
        $region58: #{tpu_custom_call.1} parent=43 // pred_check_branch
          %334 = sbr.rel (%p332) target = $region60
        $region59: #{tpu_custom_call.1} parent=43 // pred_region
          %335 = dma.done [#allocation9], 1024
        $region60: #{tpu_custom_call.1} parent=43 // pred_fallthru
          _
        %s336 = sand.u32 %s40, 1
        %s337 = scalar_lea.sflag [#allocation3], %s336
        %s338 = sand.u32 %s40, 1
        %s339 = smul.addr %s338, 16
        %s340 = scalar_lea.vmem [#allocation2], %s339
        %p341 = pneg %p53
        %p342 = pneg %p50
        %s343 = sand.u32 %s32, 1
        %s344 = scalar_lea.sflag [#allocation6], %s343
        %s345 = sand.u32 %s66, 1
        %s346 = smul.addr %s345, 8
        %s347 = scalar_lea.vmem [#allocation5], %s346
        %p348 = pneg %p79
        %p349 = pneg %p76
        %p350 = pneg %p100
        %p351 = pneg %p97
        %p352 = pneg %p121
        %p353 = pneg %p118
        %p354 = pneg %p142
        %p355 = pneg %p139
        %p356 = pneg %p163
        %p357 = pneg %p160
        %p358 = pneg %p189
        %p359 = pneg %p186
        %s360 = sand.u32 %s176, 1
        %s361 = scalar_lea.sflag [#allocation4], %s360
        %s362 = sand.u32 %s176, 1
        %s363 = smul.addr %s362, 4
        %s364 = scalar_lea.vmem [#allocation10], %s363
        %p365 = pneg %p215
        %p366 = pneg %p212
        %s367 = sand.u32 %s202, 1
        %s368 = scalar_lea.sflag [#allocation12], %s367
        %s369 = sand.u32 %s202, 1
        %s370 = smul.addr %s369, 4
        %s371 = scalar_lea.vmem [#allocation11], %s370
        %v373 = vld [vmem:[%s314] sm:$0xff]
        %v374 = vld [vmem:[%s314 + $0x8] sm:$0xff]
        %v375 = vpack.c.bf16 %v373, %v373
        %v376 = vpack.c.bf16 %v374, %v374
        %v377 = vld [vmem:[#allocation7] sm:$0xf]
        %v378 = vld [vmem:[#allocation7 + $0x4] sm:$0xf]
        %v379 = vld [vmem:[#allocation7 + $0x8] sm:$0xf]
        %v380 = vld [vmem:[#allocation7 + $0xc] sm:$0xf]
        %v381 = vld [vmem:[#allocation7 + $0x10] sm:$0xf]
        %v382 = vld [vmem:[#allocation7 + $0x14] sm:$0xf]
        %v383 = vld [vmem:[#allocation7 + $0x18] sm:$0xf]
        %v384 = vld [vmem:[#allocation7 + $0x1c] sm:$0xf]
        %v385 = vld [vmem:[#allocation7 + $0x20] sm:$0xf]
        %v386 = vld [vmem:[#allocation7 + $0x24] sm:$0xf]
        %v387 = vld [vmem:[#allocation7 + $0x28] sm:$0xf]
        %v388 = vld [vmem:[#allocation7 + $0x2c] sm:$0xf]
        %v389 = vld [vmem:[#allocation7 + $0x30] sm:$0xf]
        %v390 = vld [vmem:[#allocation7 + $0x34] sm:$0xf]
        %v391 = vld [vmem:[#allocation7 + $0x38] sm:$0xf]
        %v392 = vld [vmem:[#allocation7 + $0x3c] sm:$0xf]
        %v393 = vld [vmem:[#allocation7 + $0x40] sm:$0xf]
        %v394 = vld [vmem:[#allocation7 + $0x44] sm:$0xf]
        %v395 = vld [vmem:[#allocation7 + $0x48] sm:$0xf]
        %v396 = vld [vmem:[#allocation7 + $0x4c] sm:$0xf]
        %v397 = vld [vmem:[#allocation7 + $0x50] sm:$0xf]
        %v398 = vld [vmem:[#allocation7 + $0x54] sm:$0xf]
        %v399 = vld [vmem:[#allocation7 + $0x58] sm:$0xf]
        %v400 = vld [vmem:[#allocation7 + $0x5c] sm:$0xf]
        %v401 = vld [vmem:[#allocation7 + $0x60] sm:$0xf]
        %v402 = vld [vmem:[#allocation7 + $0x64] sm:$0xf]
        %v403 = vld [vmem:[#allocation7 + $0x68] sm:$0xf]
        %v404 = vld [vmem:[#allocation7 + $0x6c] sm:$0xf]
        %v405 = vld [vmem:[#allocation7 + $0x70] sm:$0xf]
        %v406 = vld [vmem:[#allocation7 + $0x74] sm:$0xf]
        %v407 = vld [vmem:[#allocation7 + $0x78] sm:$0xf]
        %v408 = vld [vmem:[#allocation7 + $0x7c] sm:$0xf]
        %v409 = vld [vmem:[%s3] sm:$0x1]
        %v411 = vlaneseq
        %v412 = vshrl.u32 %v411, 7
        %v413 = vsub.s32 0, %v412
        %v414 = vrot.slane %v409, %v413
        %v448 = vunpack.c.l.b16 %v377
        %v449 = vunpack.c.l.b16 %v378
        %v450 = vunpack.c.l.b16 %v379
        %v451 = vunpack.c.l.b16 %v380
        %v452 = vunpack.c.l.b16 %v381
        %v453 = vunpack.c.l.b16 %v382
        %v454 = vunpack.c.l.b16 %v383
        %v455 = vunpack.c.l.b16 %v384
        %v456 = vunpack.c.l.b16 %v385
        %v457 = vunpack.c.l.b16 %v386
        %v458 = vunpack.c.l.b16 %v387
        %v459 = vunpack.c.l.b16 %v388
        %v460 = vunpack.c.l.b16 %v389
        %v461 = vunpack.c.l.b16 %v390
        %v462 = vunpack.c.l.b16 %v391
        %v463 = vunpack.c.l.b16 %v392
        %v464 = vunpack.c.l.b16 %v393
        %v465 = vunpack.c.l.b16 %v394
        %v466 = vunpack.c.l.b16 %v395
        %v467 = vunpack.c.l.b16 %v396
        %v468 = vunpack.c.l.b16 %v397
        %v469 = vunpack.c.l.b16 %v398
        %v470 = vunpack.c.l.b16 %v399
        %v471 = vunpack.c.l.b16 %v400
        %v472 = vunpack.c.l.b16 %v401
        %v473 = vunpack.c.l.b16 %v402
        %v474 = vunpack.c.l.b16 %v403
        %v475 = vunpack.c.l.b16 %v404
        %v476 = vunpack.c.l.b16 %v405
        %v477 = vunpack.c.l.b16 %v406
        %v478 = vunpack.c.l.b16 %v407
        %v479 = vunpack.c.l.b16 %v408
        %v480 = vpack.c.b16 %v449, %v448
        %v481 = vpack.c.b16 %v451, %v450
        %v482 = vpack.c.b16 %v453, %v452
        %v483 = vpack.c.b16 %v455, %v454
        %v484 = vpack.c.b16 %v457, %v456
        %v485 = vpack.c.b16 %v459, %v458
        %v486 = vpack.c.b16 %v461, %v460
        %v487 = vpack.c.b16 %v463, %v462
        %v488 = vpack.c.b16 %v465, %v464
        %v489 = vpack.c.b16 %v467, %v466
        %v490 = vpack.c.b16 %v469, %v468
        %v491 = vpack.c.b16 %v471, %v470
        %v492 = vpack.c.b16 %v473, %v472
        %v493 = vpack.c.b16 %v475, %v474
        %v494 = vpack.c.b16 %v477, %v476
        %v495 = vpack.c.b16 %v479, %v478
        %512 = vmatprep.subr.bf16.mxu0 0
        %513 = vmatpush1.bf16.msra.mxu0 %v480
        %514 = vmatprep.subr.bf16.mxu0 0
        %515 = vmatpush1.bf16.msra.mxu0 %v481
        %516 = vmatprep.subr.bf16.mxu0 0
        %517 = vmatpush1.bf16.msra.mxu0 %v482
        %518 = vmatprep.subr.bf16.mxu0 0
        %519 = vmatpush1.bf16.msra.mxu0 %v483
        %520 = vmatprep.subr.bf16.mxu0 0
        %521 = vmatpush1.bf16.msra.mxu0 %v484
        %522 = vmatprep.subr.bf16.mxu0 0
        %523 = vmatpush1.bf16.msra.mxu0 %v485
        %524 = vmatprep.subr.bf16.mxu0 0
        %525 = vmatpush1.bf16.msra.mxu0 %v486
        %526 = vmatprep.subr.bf16.mxu0 0
        %527 = vmatpush1.bf16.msra.mxu0 %v487
        %528 = vmatprep.subr.bf16.mxu0 0
        %529 = vmatpush1.bf16.msra.mxu0 %v488
        %530 = vmatprep.subr.bf16.mxu0 0
        %531 = vmatpush1.bf16.msra.mxu0 %v489
        %532 = vmatprep.subr.bf16.mxu0 0
        %533 = vmatpush1.bf16.msra.mxu0 %v490
        %534 = vmatprep.subr.bf16.mxu0 0
        %535 = vmatpush1.bf16.msra.mxu0 %v491
        %536 = vmatprep.subr.bf16.mxu0 0
        %537 = vmatpush1.bf16.msra.mxu0 %v492
        %538 = vmatprep.subr.bf16.mxu0 0
        %539 = vmatpush1.bf16.msra.mxu0 %v493
        %540 = vmatprep.subr.bf16.mxu0 0
        %541 = vmatpush1.bf16.msra.mxu0 %v494
        %542 = vmatprep.subr.bf16.mxu0 0
        %543 = vmatpush1.bf16.msra.mxu0 %v495
        %544 = vmatprep.mubr.bf16.mxu0 %v376
        %545 = vmatmul.mubr.bf16.gmra.mrb[0].mxu0 %v375
        %v546 = vpop.f32.mrb[0].mxu0
        %v547 = vadd.f32 %v414, %v546
        %v548 = vpop.f32.mrb[0].mxu0
        %v549 = vpop.f32.mrb[0].mxu0
        %v550 = vpop.f32.mrb[0].mxu0
        %551 = vdwg.mxu0
        %v552 = vmul.f32 %v547, %v547
        %553 = vadd.xlane.f32.xlu0 %v552
        %v554 = vpop.xlane.xlu0 %553
        %v555 = vadd.f32 %v554, 1e-12
        %v556 = vrsqrt.pop %v555
        %v557 = vmul.f32 %v547, %v556
        %v558 = vpack.c.bf16 %v557, %v557
        %559 = vst [vmem:[%s364] sm:$0xf] %v558
        %v560 = vld [vmem:[%s323] sm:$0xff]
        %v561 = vpack.c.bf16 %v560, %v560
        %v562 = vld [vmem:[#allocation8] sm:$0xf]
        %v563 = vld [vmem:[#allocation8 + $0x4] sm:$0xf]
        %v564 = vld [vmem:[#allocation8 + $0x8] sm:$0xf]
        %v565 = vld [vmem:[#allocation8 + $0xc] sm:$0xf]
        %v566 = vld [vmem:[#allocation8 + $0x10] sm:$0xf]
        %v567 = vld [vmem:[#allocation8 + $0x14] sm:$0xf]
        %v568 = vld [vmem:[#allocation8 + $0x18] sm:$0xf]
        %v569 = vld [vmem:[#allocation8 + $0x1c] sm:$0xf]
        %v570 = vld [vmem:[#allocation8 + $0x20] sm:$0xf]
        %v571 = vld [vmem:[#allocation8 + $0x24] sm:$0xf]
        %v572 = vld [vmem:[#allocation8 + $0x28] sm:$0xf]
        %v573 = vld [vmem:[#allocation8 + $0x2c] sm:$0xf]
        %v574 = vld [vmem:[#allocation8 + $0x30] sm:$0xf]
        %v575 = vld [vmem:[#allocation8 + $0x34] sm:$0xf]
        %v576 = vld [vmem:[#allocation8 + $0x38] sm:$0xf]
        %v577 = vld [vmem:[#allocation8 + $0x3c] sm:$0xf]
        %v578 = vld [vmem:[%s5] sm:$0x1]
        %v580 = vlaneseq
        %v581 = vshrl.u32 %v580, 7
        %v582 = vsub.s32 0, %v581
        %v583 = vrot.slane %v578, %v582
        %v601 = vunpack.c.l.b16 %v562
        %v602 = vunpack.c.l.b16 %v563
        %v603 = vunpack.c.l.b16 %v564
        %v604 = vunpack.c.l.b16 %v565
        %v605 = vunpack.c.l.b16 %v566
        %v606 = vunpack.c.l.b16 %v567
        %v607 = vunpack.c.l.b16 %v568
        %v608 = vunpack.c.l.b16 %v569
        %v609 = vunpack.c.l.b16 %v570
        %v610 = vunpack.c.l.b16 %v571
        %v611 = vunpack.c.l.b16 %v572
        %v612 = vunpack.c.l.b16 %v573
        %v613 = vunpack.c.l.b16 %v574
        %v614 = vunpack.c.l.b16 %v575
        %v615 = vunpack.c.l.b16 %v576
        %v616 = vunpack.c.l.b16 %v577
        %v617 = vpack.c.b16 %v602, %v601
        %v618 = vpack.c.b16 %v604, %v603
        %v619 = vpack.c.b16 %v606, %v605
        %v620 = vpack.c.b16 %v608, %v607
        %v621 = vpack.c.b16 %v610, %v609
        %v622 = vpack.c.b16 %v612, %v611
        %v623 = vpack.c.b16 %v614, %v613
        %v624 = vpack.c.b16 %v616, %v615
        %633 = vmatprep.subr.bf16.mxu0 0
        %634 = vmatpush1.bf16.msra.mxu0 %v617
        %635 = vmatprep.subr.bf16.mxu0 0
        %636 = vmatpush1.bf16.msra.mxu0 %v618
        %637 = vmatprep.subr.bf16.mxu0 0
        %638 = vmatpush1.bf16.msra.mxu0 %v619
        %639 = vmatprep.subr.bf16.mxu0 0
        %640 = vmatpush1.bf16.msra.mxu0 %v620
        %641 = vmatprep.subr.bf16.mxu0 0
        %642 = vmatpush1.bf16.msra.mxu0 %v621
        %643 = vmatprep.subr.bf16.mxu0 0
        %644 = vmatpush1.bf16.msra.mxu0 %v622
        %645 = vmatprep.subr.bf16.mxu0 0
        %646 = vmatpush1.bf16.msra.mxu0 %v623
        %647 = vmatprep.subr.bf16.mxu0 0
        %648 = vmatpush1.bf16.msra.mxu0 %v624
        %649 = vmatprep.subr.bf16.mxu0 0
        %650 = vmatpush1.bf16.msra.mxu0 0
        %651 = vmatprep.subr.bf16.mxu0 0
        %652 = vmatpush1.bf16.msra.mxu0 0
        %653 = vmatprep.subr.bf16.mxu0 0
        %654 = vmatpush1.bf16.msra.mxu0 0
        %655 = vmatprep.subr.bf16.mxu0 0
        %656 = vmatpush1.bf16.msra.mxu0 0
        %657 = vmatprep.subr.bf16.mxu0 0
        %658 = vmatpush1.bf16.msra.mxu0 0
        %659 = vmatprep.subr.bf16.mxu0 0
        %660 = vmatpush1.bf16.msra.mxu0 0
        %661 = vmatprep.subr.bf16.mxu0 0
        %662 = vmatpush1.bf16.msra.mxu0 0
        %663 = vmatprep.subr.bf16.mxu0 0
        %664 = vmatpush1.bf16.msra.mxu0 0
        %665 = vmatprep.mubr.bf16.mxu0 0
        %666 = vmatmul.mubr.bf16.gmra.mrb[0].mxu0 %v561
        %v667 = vpop.f32.mrb[0].mxu0
        %v668 = vadd.f32 %v583, %v667
        %v669 = vpop.f32.mrb[0].mxu0
        %v670 = vpop.f32.mrb[0].mxu0
        %v671 = vpop.f32.mrb[0].mxu0
        %672 = vdwg.mxu0
        %v673 = vmul.f32 %v668, %v668
        %674 = vadd.xlane.f32.xlu0 %v673
        %v675 = vpop.xlane.xlu0 %674
        %v676 = vadd.f32 %v675, 1e-12
        %v677 = vrsqrt.pop %v676
        %v678 = vmul.f32 %v668, %v677
        %v679 = vpack.c.bf16 %v678, %v678
        %680 = vst [vmem:[%s371] sm:$0xf] %v679
        %s681 = sand.u32 %s176, 1
        %s682 = scalar_lea.sflag [#allocation4], %s681
        %s683 = sand.u32 %s176, 1
        %s684 = smul.addr %s683, 4
        %s685 = scalar_lea.vmem [#allocation10], %s684
        %s686 = sand.u32 %s202, 1
        %s687 = scalar_lea.sflag [#allocation12], %s686
        %s688 = sand.u32 %s202, 1
        %s689 = smul.addr %s688, 4
        %s690 = scalar_lea.vmem [#allocation11], %s689
        // Predicated region
        $region61: #{tpu_custom_call.1} parent=43 // pred_check
          %p691 = pneg %p186
        $region62: #{tpu_custom_call.1} parent=43 // pred_check_branch
          %693 = sbr.rel (%p691) target = $region64
        $region63: #{tpu_custom_call.1} parent=43 // pred_region
          %s695 = ssub.s32 64, 64
          %696 = vsyncadd %s682, %s695
          %s697 = smul.addr %s32, 64
          %s698 = scalar_lea.hbm %s6, %s697
          %s700 = sshll.u32 %s685, 4
          %s701 = int_to_ptr.vmem [resolvable:$true] %s700
          %703 = dma.vmem_to_hbm [thread:$0]  %s701, 64, %s698, %s682
        $region64: #{tpu_custom_call.1} parent=43 // pred_fallthru
          _
        // Predicated region
        $region65: #{tpu_custom_call.1} parent=43 // pred_check
          %p704 = pneg %p212
        $region66: #{tpu_custom_call.1} parent=43 // pred_check_branch
          %706 = sbr.rel (%p704) target = $region68
        $region67: #{tpu_custom_call.1} parent=43 // pred_region
          %s708 = ssub.s32 64, 64
          %709 = vsyncadd %s687, %s708
          %s710 = smul.addr %s32, 64
          %s711 = scalar_lea.hbm %s7, %s710
          %s713 = sshll.u32 %s690, 4
          %s714 = int_to_ptr.vmem [resolvable:$true] %s713
          %716 = dma.vmem_to_hbm [thread:$0]  %s714, 64, %s711, %s687
        $region68: #{tpu_custom_call.1} parent=43 // pred_fallthru
          _
      $region44: #{tpu_custom_call.1} parent=5 // pred_fallthru
        _
      %p717 = scmp.le.s32.totalorder 2, %s27
      // Predicated region
      $region69: #{tpu_custom_call.1} parent=5 // pred_check
        %p718 = pneg %p717
      $region70: #{tpu_custom_call.1} parent=5 // pred_check_branch
        %720 = sbr.rel (%p718) target = $region72
      $region71: #{tpu_custom_call.1} parent=5 // pred_region
        %s721 = ssub.s32 %s27, 2
        // Predicated region
        $region73: #{tpu_custom_call.1} parent=71 // pred_check
          %p722 = pneg %p192
        $region74: #{tpu_custom_call.1} parent=71 // pred_check_branch
          %724 = sbr.rel (%p722) target = $region76
        $region75: #{tpu_custom_call.1} parent=71 // pred_region
          %s725 = sand.u32 %s177, 1
          %s726 = scalar_lea.sflag [#allocation4], %s725
          %s727 = sand.u32 %s177, 1
          %s728 = smul.addr %s727, 4
          %s729 = scalar_lea.vmem [#allocation10], %s728
          %730 = dma.done %s726, 64
        $region76: #{tpu_custom_call.1} parent=71 // pred_fallthru
          _
        // Predicated region
        $region77: #{tpu_custom_call.1} parent=71 // pred_check
          %p731 = pneg %p218
        $region78: #{tpu_custom_call.1} parent=71 // pred_check_branch
          %733 = sbr.rel (%p731) target = $region80
        $region79: #{tpu_custom_call.1} parent=71 // pred_region
          %s734 = sand.u32 %s203, 1
          %s735 = scalar_lea.sflag [#allocation12], %s734
          %s736 = sand.u32 %s203, 1
          %s737 = smul.addr %s736, 4
          %s738 = scalar_lea.vmem [#allocation11], %s737
          %739 = dma.done %s735, 64
        $region80: #{tpu_custom_call.1} parent=71 // pred_fallthru
          _
      $region72: #{tpu_custom_call.1} parent=5 // pred_fallthru
        _
    $region6: #{tpu_custom_call.1} parent=1 // loop_footer
      %s31 = sadd.s32 1, %s27
    $region7: #{tpu_custom_call.1} parent=1 // loop_footer_branch
      %26 = sbr.rel target = $region3
    $region8: #{tpu_custom_call.1} parent=1 // loop_exit
      _
    %740 = vsyncpa [#allocation3], 1
    %s741 = scalar_lea.sflag [#allocation3], 1
    %742 = vsyncpa %s741, 1
    %743 = vsyncpa [#allocation6], 1
    %s744 = scalar_lea.sflag [#allocation6], 1
    %745 = vsyncpa %s744, 1
    %746 = vsyncpa [#allocation9], 1
    %747 = vsyncpa [#allocation4], 1
    %s748 = scalar_lea.sflag [#allocation4], 1
    %749 = vsyncpa %s748, 1
    %750 = vsyncpa [#allocation12], 1
    %s751 = scalar_lea.sflag [#allocation12], 1
    %752 = vsyncpa %s751, 1

</llo_original>
